<compile_context>
chip_gen: v6e
topology: v6e:2x2x1
jax: 0.10.0
libtpu: 0.0.40
codegen_flags: <defaults>
</compile_context>

<pallas_src>
import jax
import jax.numpy as jnp
from jax.experimental import pallas as pl
from jax.experimental.pallas import tpu as pltpu

# ----------------------------- model constants -----------------------------
B_DEF = 2            # batch
IMG_C = 3            # RGB
IMG_H = IMG_W = 32   # padded image size (already a multiple of size_divisibility)
HW_FULL = IMG_H * IMG_W                  # 1024
CLIP_HW = (IMG_H // 2) * (IMG_W // 2)    # 256  (clip_resolution = 0.5)
D_VIS = 32           # stub visual feature dim
D_TXT = 32           # stub text feature dim
NUM_Q = 8            # side-adapter queries
N_CLS = 6            # ov classifier classes (last = "no object" / bg)
C_EMB = 32           # mask-embedding dim
MASK_H = MASK_W = 8  # mask / heatmap prediction resolution
HW_MASK = MASK_H * MASK_W                # 64
N_TOK = 16           # stub visual tokens
N_STAGES = 2         # deep-supervision stages (aux stage feeds only the criterion)
N_FINDINGS = 5       # finding-classifier outputs
N_HEAD_COLS = 2 * HW_MASK + C_EMB        # 160 fused head columns [mask|heat|emb]

CF_ROWS = 56         # packed f32 constants  (56 x 128)
CB_ROWS = 48         # packed bf16 constants (48 x 160)


# ============================ fused Pallas kernel ===========================

def _fused_forward_kernel(img_ref, nrm_ref, txt_ref, cf_ref, cb_ref,
                          wds_ref, mup_ref, slab_ref, imginp_ref):
    f32, bf16 = jnp.float32, jnp.bfloat16
    BC = img_ref.shape[0]                 # B * C  (batch folded along sublanes)
    C = IMG_C
    B = BC // C
    HW = img_ref.shape[1]

    # ---- packed-constant static views --------------------------------------
    mean_bc = cf_ref[0:BC, 0:1]                              # (B*C, 1)
    istd_bc = cf_ref[0:BC, 1:2]                              # (B*C, 1)
    wf_img = cf_ref[8:8 + C, 0:N_FINDINGS]                   # (C, NF)
    wf_nrm = cf_ref[16:16 + C, 0:N_FINDINGS]                 # (C, NF)
    wf_txt = cf_ref[24:24 + D_TXT, 0:N_FINDINGS]             # (D_TXT, NF)

    qe = cb_ref[0:NUM_Q, 0:D_VIS]                            # (Q, D_VIS) bf16
    m_heads = cb_ref[8:8 + C, :]                             # (C, 160)  bf16
    w_txt_rec = cb_ref[16:16 + D_TXT, 0:C_EMB]               # (D_TXT, C_EMB) bf16
    ov_w = cb_ref[16:16 + C_EMB, C_EMB:C_EMB + N_CLS]        # (C_EMB, N_CLS) bf16

    # ---- pixel normalization: (x - pixel_mean) * (1/pixel_std) --------------
    img_n = (img_ref[...] - mean_bc) * istd_bc               # (B*C, HW) f32

    # ---- clip_input 0.5x bilinear + clip_visual_extractor spatial mixing,
    #      composed at pack time into ONE matmul.
    # TODO(synk): frozen BiomedCLIP ViT trunk is an external submodule; stubbed.
    tok = jnp.dot(img_n.astype(bf16), wds_ref[...],
                  preferred_element_type=f32)                # (B*C, D_VIS)

    # ---- side_adapter_network stub: clip_vis / query-attn / per-stage heads
    #      folded into m_heads = w_chan.T @ [w_mask | w_heat | w_bias @ w_rec].
    # TODO(synk): the real side-adapter network is an external submodule; stubbed.
    a3 = jax.lax.dot_general(tok.astype(bf16), qe,
                             (((1,), (1,)), ((), ())),
                             preferred_element_type=f32)     # (B*C, Q)

    # ---- clip_text stub: text feature -> rec-head bias (w_txt @ w_rec folded).
    # TODO(synk): PubMedBERT text tower + tokenizer are external; stubbed.
    txt = txt_ref[...]                                       # (B, D_TXT) f32
    txt_emb = jnp.dot(txt.astype(bf16), w_txt_rec,
                      preferred_element_type=f32)            # (B, C_EMB)

    preds_rows, emb_rows = [], []
    for b in range(B):                                       # tiny, unrolled
        hb = jax.lax.dot_general(a3[b * C:(b + 1) * C, :].astype(bf16), m_heads,
                                 (((0,), (0,)), ((), ())),
                                 preferred_element_type=f32)  # (Q, 160)
        preds_rows.append(hb[:, 0:2 * HW_MASK])               # (Q, 128) [mask|heat]
        emb_rows.append(hb[:, 2 * HW_MASK:2 * HW_MASK + C_EMB]
                        + txt_emb[b:b + 1, :])                 # (Q, C_EMB)
    preds = jnp.concatenate(preds_rows, axis=0)                # (B*Q, 128)
    emb = jnp.concatenate(emb_rows, axis=0)                    # (B*Q, C_EMB)

    # ---- clip_rec_head stub (normalize=True) + mask_logits einsum -----------
    # TODO(synk): RecWithAttnbiasHead is external; stubbed.  Aux-stage
    # embeddings/logits feed only SetCriterion_v2 aux losses (not translated).
    emb = emb * jax.lax.rsqrt(jnp.sum(emb * emb, axis=-1, keepdims=True) + 1e-12)
    logits = jnp.dot(emb.astype(bf16), ov_w,
                     preferred_element_type=f32)               # (B*Q, N_CLS)

    # ---- train_semantic_inference (both maps, shared softmax / one sigmoid
    #      pass over the full 128-lane [mask|heat] slab), channel [-1] of [:-1]
    mx = jnp.max(logits, axis=-1, keepdims=True)
    ex = jnp.exp(logits - mx)
    p_sel = ex[:, N_CLS - 2:N_CLS - 1] * pl.reciprocal(
        jnp.sum(ex, axis=-1, keepdims=True), approx=True)      # (B*Q, 1)
    weighted = p_sel * jax.nn.sigmoid(preds)                   # (B*Q, 128)
    sem_small = jnp.concatenate(
        [jnp.sum(weighted[b * NUM_Q:(b + 1) * NUM_Q, :], axis=0, keepdims=True)
         for b in range(B)], axis=0)                           # (B, 128)

    # ---- align_corners=True bilinear upsample: both maps x both batch items
    #      in ONE matmul against the composed (64, 1024) Kronecker matrix.
    sem_stack = jnp.concatenate([sem_small[:, 0:HW_MASK],
                                 sem_small[:, HW_MASK:2 * HW_MASK]],
                                axis=0)                        # (2B, 64)
    sem_up = jnp.dot(sem_stack.astype(bf16), mup_ref[...],
                     preferred_element_type=f32)               # (2B, HW)
    sem_mask_up = sem_up[0:B]                                  # semseg_mask2 source
    sem_heat_up = sem_up[B:2 * B]                              # semseg_mask1 source

    # image_input = images.tensor * (semseg1 / 255) * ((semseg2 / 255) > 0)
    # (/255 before the >0 compare is a no-op: sem_mask_up >= 0 by construction)
    factor = sem_heat_up * (1.0 / 255.0) * (sem_mask_up > 0.0).astype(f32)  # (B, HW)
    factor_bc = jnp.concatenate(
        [jnp.broadcast_to(factor[b:b + 1, :], (C, HW)) for b in range(B)],
        axis=0)                                                # (B*C, HW)
    image_input = img_n * factor_bc
    imginp_ref[...] = image_input                              # 1024-lane store

    # ---- finding_classifier stub: GAP + linear over [image_input|normal|text]
    # TODO(synk): TiaiClassifier internals are external; stubbed.
    pooled_img = jnp.mean(image_input, axis=-1, keepdims=True)            # (B*C, 1)
    pooled_nrm = (jnp.mean(nrm_ref[...], axis=-1, keepdims=True)
                  - mean_bc) * istd_bc                                    # (B*C, 1)
    f_rows = []
    for b in range(B):
        fi = jnp.sum(pooled_img[b * C:(b + 1) * C, :] * wf_img,
                     axis=0, keepdims=True)                               # (1, NF)
        fn = jnp.sum(pooled_nrm[b * C:(b + 1) * C, :] * wf_nrm,
                     axis=0, keepdims=True)                               # (1, NF)
        f_rows.append(fi + fn)
    finding = (jnp.concatenate(f_rows, axis=0)
               + jnp.dot(txt, wf_txt, preferred_element_type=f32))        # (B, NF)

    # ---- single lane-dense (128-wide) output slab ----------------------------
    # rows [0, B*Q)        : [pred_masks | pred_heatmaps]
    # rows [B*Q, 2*B*Q)    : pred_logits in lanes [0, N_CLS)
    # rows [2*B*Q, 2*B*Q+B): finding_logits in lanes [0, N_FINDINGS)
    nq = B * NUM_Q
    slab_ref[0:nq, :] = preds
    slab_ref[nq:2 * nq, :] = jnp.zeros_like(preds)
    slab_ref[nq:2 * nq, 0:N_CLS] = logits
    slab_ref[2 * nq:, :] = jnp.zeros(
        (slab_ref.shape[0] - 2 * nq, 2 * HW_MASK), f32)
    slab_ref[2 * nq:2 * nq + B, 0:N_FINDINGS] = finding


# ============================== JAX glue ====================================

def _interp_matrix(in_size, out_size, align_corners):
    """Row-interpolation matrix (out_size, in_size) matching F.interpolate bilinear."""
    out_idx = jnp.arange(out_size, dtype=jnp.float32)
    if align_corners and out_size > 1:
        src = out_idx * ((in_size - 1) / (out_size - 1))
    else:
        scale = in_size / out_size
        src = jnp.clip((out_idx + 0.5) * scale - 0.5, 0.0, in_size - 1)
    lo = jnp.floor(src).astype(jnp.int32)
    hi = jnp.minimum(lo + 1, in_size - 1)
    w_hi = src - lo.astype(jnp.float32)
    w_lo = 1.0 - w_hi
    m = jnp.zeros((out_size, in_size), jnp.float32)
    m = m.at[jnp.arange(out_size), lo].add(w_lo)
    m = m.at[jnp.arange(out_size), hi].add(w_hi)
    return m


def init_params(key):
    ks = jax.random.split(key, 13)
    p = {}
    p["pixel_mean"] = jnp.array([0.48145466, 0.4578275, 0.40821073], jnp.float32) * 255.0
    p["pixel_std"] = jnp.array([0.26862954, 0.26130258, 0.27577711], jnp.float32) * 255.0
    p["logit_scale"] = jnp.float32(jnp.log(10.0))
    w = jax.random.normal(ks[0], (N_CLS, C_EMB), jnp.float32)
    p["ov_weight"] = w / jnp.linalg.norm(w, axis=-1, keepdims=True)
    p["w_spat"] = 0.05 * jax.random.normal(ks[1], (CLIP_HW, D_VIS), jnp.float32)
    p["w_chan"] = 0.05 * jax.random.normal(ks[2], (N_TOK, IMG_C), jnp.float32)
    p["query_embed"] = 0.05 * jax.random.normal(ks[3], (NUM_Q, D_VIS), jnp.float32)
    p["w_mask"] = [0.05 * jax.random.normal(ks[4 + i], (N_TOK, HW_MASK), jnp.float32)
                   for i in range(N_STAGES)]
    p["w_heat"] = [0.05 * jax.random.normal(ks[6 + i], (N_TOK, HW_MASK), jnp.float32)
                   for i in range(N_STAGES)]
    p["w_bias"] = [0.05 * jax.random.normal(ks[8 + i], (N_TOK, D_VIS), jnp.float32)
                   for i in range(N_STAGES)]
    p["w_txt"] = 0.05 * jax.random.normal(ks[10], (D_TXT, D_VIS), jnp.float32)
    p["w_rec"] = 0.05 * jax.random.normal(ks[11], (D_VIS, C_EMB), jnp.float32)
    p["w_find"] = 0.05 * jax.random.normal(ks[12], (2 * IMG_C + D_TXT, N_FINDINGS), jnp.float32)
    return p


def pack_params(p, batch=B_DEF):
    """One-time host-side packing: composed bilinear/head matrices, bf16 casts
    for every MXU operand, and two packed constant buffers (f32 + bf16)."""
    f32, bf16 = jnp.float32, jnp.bfloat16

    # composed per-plane 0.5x downsample + stub spatial mixing (one (1024,32) matrix)
    mh_d = _interp_matrix(IMG_H, IMG_H // 2, align_corners=False)
    mw_d = _interp_matrix(IMG_W, IMG_W // 2, align_corners=False)
    m_down_t = jnp.kron(mh_d, mw_d).T                               # (1024, 256)
    w_down_spat = (m_down_t @ p["w_spat"]).astype(bf16)             # (1024, 32)

    # composed align_corners=True upsample of the 8x8 semseg to 32x32 (bf16)
    mh_u = _interp_matrix(MASK_H, IMG_H, align_corners=True)
    mw_u = _interp_matrix(MASK_W, IMG_W, align_corners=True)
    m_up_t = jnp.kron(mh_u, mw_u).T.astype(bf16)                    # (64, 1024)

    # fused final-stage head: bias head folded through w_rec, then the stub
    # clip_vis / query-attention folded in via w_chan.T .
    # TODO(synk): aux deep-supervision stage feeds only criterion aux losses; omitted.
    w_head_cat = jnp.concatenate(
        [p["w_mask"][-1], p["w_heat"][-1], p["w_bias"][-1] @ p["w_rec"]],
        axis=1)                                                     # (N_TOK, 160)
    m_heads = (p["w_chan"].T @ w_head_cat).astype(bf16)             # (C, 160)

    w_txt_rec = (p["w_txt"] @ p["w_rec"]).astype(bf16)              # (D_TXT, C_EMB)
    # ov_classifier_weight = logit_scale.exp() * classifier  (module op, transposed)
    ov_w_t = (jnp.exp(p["logit_scale"]) * p["ov_weight"]).T.astype(bf16)  # (C_EMB, N_CLS)

    # ---- packed f32 constants (CF_ROWS x 128) ----
    mean = p["pixel_mean"]
    istd = 1.0 / p["pixel_std"]
    cf = jnp.zeros((CF_ROWS, 128), f32)
    cf = cf.at[0:batch * IMG_C, 0].set(jnp.tile(mean, (batch,)))
    cf = cf.at[0:batch * IMG_C, 1].set(jnp.tile(istd, (batch,)))
    wf = p["w_find"]
    cf = cf.at[8:8 + IMG_C, 0:N_FINDINGS].set(wf[0:IMG_C])
    cf = cf.at[16:16 + IMG_C, 0:N_FINDINGS].set(wf[IMG_C:2 * IMG_C])
    cf = cf.at[24:24 + D_TXT, 0:N_FINDINGS].set(wf[2 * IMG_C:])

    # ---- packed bf16 constants (CB_ROWS x 160) ----
    cb = jnp.zeros((CB_ROWS, N_HEAD_COLS), bf16)
    cb = cb.at[0:NUM_Q, 0:D_VIS].set(p["query_embed"].astype(bf16))
    cb = cb.at[8:8 + IMG_C, :].set(m_heads)
    cb = cb.at[16:16 + D_TXT, 0:C_EMB].set(w_txt_rec)
    cb = cb.at[16:16 + C_EMB, C_EMB:C_EMB + N_CLS].set(ov_w_t)

    return dict(cf=cf, cb=cb, w_down_spat=w_down_spat, m_up=m_up_t)


def forward(pk, images, normal_images, transcripts_feat, finding_gt):
    B, C, H, W = images.shape
    HW = H * W

    # TODO(synk): ImageList.from_tensors padding to size_divisibility is skipped;
    # inputs in this synthetic setup are already divisible.
    img2 = images.reshape(B * C, HW)
    nrm2 = normal_images.reshape(B * C, HW)
    slab_rows = 2 * B * NUM_Q + 8                       # preds | logits | finding (padded)

    def full(shape):
        return pl.BlockSpec(shape, lambda i: (0,) * len(shape))

    in_specs = [
        full((B * C, HW)),                              # images (batch folded)
        full((B * C, HW)),                              # normal images
        full((B, D_TXT)),                               # text features
        full((CF_ROWS, 128)),                           # packed f32 constants
        full((CB_ROWS, N_HEAD_COLS)),                   # packed bf16 constants
        full((HW, D_VIS)),                              # composed downsample+mix
        full((HW_MASK, HW)),                            # composed upsample
    ]
    out_specs = (full((slab_rows, 2 * HW_MASK)), full((B * C, HW)))
    out_shape = (jax.ShapeDtypeStruct((slab_rows, 2 * HW_MASK), jnp.float32),
                 jax.ShapeDtypeStruct((B * C, HW), jnp.float32))

    slab, imginp = pl.pallas_call(
        _fused_forward_kernel,
        out_shape=out_shape,
        grid=(1,),
        in_specs=in_specs,
        out_specs=out_specs,
        compiler_params=pltpu.CompilerParams(dimension_semantics=("arbitrary",)),
    )(img2, nrm2, transcripts_feat, pk["cf"], pk["cb"],
      pk["w_down_spat"], pk["m_up"])

    nq = B * NUM_Q
    preds = slab[0:nq].reshape(B, NUM_Q, 2 * HW_MASK)
    pred_masks = preds[:, :, 0:HW_MASK].reshape(B, NUM_Q, MASK_H, MASK_W)
    pred_heatmaps = preds[:, :, HW_MASK:].reshape(B, NUM_Q, MASK_H, MASK_W)
    pred_logits = slab[nq:2 * nq, 0:N_CLS].reshape(B, NUM_Q, N_CLS)
    finding_logits = slab[2 * nq:2 * nq + B, 0:N_FINDINGS]
    image_input = imginp.reshape(B, C, H, W)

    # TODO(synk): SetCriterion_v2 / HungarianMatcher losses (training), aux_outputs
    # and the per-image sem_seg_postprocess resizing (inference) are external.
    return {
        "pred_logits": pred_logits,
        "pred_masks": pred_masks,
        "pred_heatmaps": pred_heatmaps,
        "finding_logits": finding_logits,
        "finding_gt": finding_gt,
        "image_input": image_input,
    }


if __name__ == "__main__":
    key = jax.random.PRNGKey(0)
    k_img, k_nrm, k_txt, k_gt, k_par = jax.random.split(key, 5)
    images = jax.random.uniform(k_img, (B_DEF, IMG_C, IMG_H, IMG_W), jnp.float32, 0.0, 255.0)
    normal_images = jax.random.uniform(k_nrm, (B_DEF, IMG_C, IMG_H, IMG_W), jnp.float32, 0.0, 255.0)
    transcripts_feat = jax.random.normal(k_txt, (B_DEF, D_TXT), jnp.float32)
    finding_gt = jax.random.bernoulli(k_gt, 0.5, (B_DEF, N_FINDINGS)).astype(jnp.float32)

    params = init_params(k_par)
    packed = pack_params(params, batch=B_DEF)

    out = jax.jit(forward)(packed, images, normal_images, transcripts_feat, finding_gt)
    out = jax.block_until_ready(out)

    assert all(bool(jnp.all(jnp.isfinite(v))) for v in jax.tree_util.tree_leaves(out))
    print("KERNEL_OK")
</pallas_src>

<mosaic_0001>
module attributes {stable_mosaic.version = 11 : i64} {
  func.func @_fused_forward_kernel(%arg0: i32, %arg1: memref<6x1024xf32, #tpu.memory_space<vmem>>, %arg2: memref<6x1024xf32, #tpu.memory_space<vmem>>, %arg3: memref<2x32xf32, #tpu.memory_space<vmem>>, %arg4: memref<56x128xf32, #tpu.memory_space<vmem>>, %arg5: memref<48x160xbf16, #tpu.memory_space<vmem>>, %arg6: memref<1024x32xbf16, #tpu.memory_space<vmem>>, %arg7: memref<64x1024xbf16, #tpu.memory_space<vmem>>, %arg8: memref<40x128xf32, #tpu.memory_space<vmem>>, %arg9: memref<6x1024xf32, #tpu.memory_space<vmem>>) attributes {dimension_semantics = [#tpu.dimension_semantics<arbitrary>], iteration_bounds = array<i64: 1>, scalar_prefetch = 0 : i64, scratch_operands = 0 : i64, tpu.core_type = #tpu.core_type<tc>, window_params = [{pipeline_mode = #tpu.pipeline_mode<synchronous>, transform_indices = @transform_0, window_bounds = array<i64: 6, 1024>}, {pipeline_mode = #tpu.pipeline_mode<synchronous>, transform_indices = @transform_1, window_bounds = array<i64: 6, 1024>}, {pipeline_mode = #tpu.pipeline_mode<synchronous>, transform_indices = @transform_2, window_bounds = array<i64: 2, 32>}, {pipeline_mode = #tpu.pipeline_mode<synchronous>, transform_indices = @transform_3, window_bounds = array<i64: 56, 128>}, {pipeline_mode = #tpu.pipeline_mode<synchronous>, transform_indices = @transform_4, window_bounds = array<i64: 48, 160>}, {pipeline_mode = #tpu.pipeline_mode<synchronous>, transform_indices = @transform_5, window_bounds = array<i64: 1024, 32>}, {pipeline_mode = #tpu.pipeline_mode<synchronous>, transform_indices = @transform_6, window_bounds = array<i64: 64, 1024>}, {pipeline_mode = #tpu.pipeline_mode<synchronous>, transform_indices = @transform_7, window_bounds = array<i64: 40, 128>}, {pipeline_mode = #tpu.pipeline_mode<synchronous>, transform_indices = @transform_8, window_bounds = array<i64: 6, 1024>}]} {
    %c0 = arith.constant 0 : index
    %c0_0 = arith.constant 0 : index
    %0 = vector.load %arg4[%c0, %c0_0] : memref<56x128xf32, #tpu.memory_space<vmem>>, vector<6x1xf32>
    %c0_1 = arith.constant 0 : index
    %c1 = arith.constant 1 : index
    %1 = vector.load %arg4[%c0_1, %c1] : memref<56x128xf32, #tpu.memory_space<vmem>>, vector<6x1xf32>
    %c8 = arith.constant 8 : index
    %c0_2 = arith.constant 0 : index
    %2 = vector.load %arg4[%c8, %c0_2] : memref<56x128xf32, #tpu.memory_space<vmem>>, vector<3x5xf32>
    %c16 = arith.constant 16 : index
    %c0_3 = arith.constant 0 : index
    %3 = vector.load %arg4[%c16, %c0_3] : memref<56x128xf32, #tpu.memory_space<vmem>>, vector<3x5xf32>
    %c24 = arith.constant 24 : index
    %c0_4 = arith.constant 0 : index
    %4 = vector.load %arg4[%c24, %c0_4] : memref<56x128xf32, #tpu.memory_space<vmem>>, vector<32x5xf32>
    %c0_5 = arith.constant 0 : index
    %c0_6 = arith.constant 0 : index
    %5 = vector.load %arg5[%c0_5, %c0_6] : memref<48x160xbf16, #tpu.memory_space<vmem>>, vector<8x32xbf16>
    %c8_7 = arith.constant 8 : index
    %c0_8 = arith.constant 0 : index
    %6 = vector.load %arg5[%c8_7, %c0_8] : memref<48x160xbf16, #tpu.memory_space<vmem>>, vector<3x160xbf16>
    %c16_9 = arith.constant 16 : index
    %c0_10 = arith.constant 0 : index
    %7 = vector.load %arg5[%c16_9, %c0_10] : memref<48x160xbf16, #tpu.memory_space<vmem>>, vector<32x32xbf16>
    %c16_11 = arith.constant 16 : index
    %c32 = arith.constant 32 : index
    %8 = vector.load %arg5[%c16_11, %c32] : memref<48x160xbf16, #tpu.memory_space<vmem>>, vector<32x6xbf16>
    %c0_12 = arith.constant 0 : index
    %c0_13 = arith.constant 0 : index
    %9 = vector.load %arg1[%c0_12, %c0_13] : memref<6x1024xf32, #tpu.memory_space<vmem>>, vector<6x1024xf32>
    %10 = vector.broadcast %0 : vector<6x1xf32> to vector<6x1024xf32>
    %11 = arith.subf %9, %10 : vector<6x1024xf32>
    %12 = vector.broadcast %1 : vector<6x1xf32> to vector<6x1024xf32>
    %13 = arith.mulf %11, %12 : vector<6x1024xf32>
    %14 = arith.truncf %13 : vector<6x1024xf32> to vector<6x1024xbf16>
    %c0_14 = arith.constant 0 : index
    %c0_15 = arith.constant 0 : index
    %15 = vector.load %arg6[%c0_14, %c0_15] : memref<1024x32xbf16, #tpu.memory_space<vmem>>, vector<1024x32xbf16>
    %cst = arith.constant dense<0.000000e+00> : vector<6x32xf32>
    %16 = tpu.matmul %14, %15, %cst {dimension_numbers = #tpu.dot_dimension_numbers<[1], [0], [0], [1], [0, 0, 1, 1], [], []>} : vector<6x1024xbf16>, vector<1024x32xbf16>, vector<6x32xf32> -> vector<6x32xf32>
    %17 = arith.truncf %16 : vector<6x32xf32> to vector<6x32xbf16>
    %cst_16 = arith.constant dense<0.000000e+00> : vector<6x8xf32>
    %18 = tpu.matmul %17, %5, %cst_16 {dimension_numbers = #tpu.dot_dimension_numbers<[1], [1], [0], [0], [0, 0, 1, 0], [], []>} : vector<6x32xbf16>, vector<8x32xbf16>, vector<6x8xf32> -> vector<6x8xf32>
    %c0_17 = arith.constant 0 : index
    %c0_18 = arith.constant 0 : index
    %19 = vector.load %arg3[%c0_17, %c0_18] : memref<2x32xf32, #tpu.memory_space<vmem>>, vector<2x32xf32>
    %20 = arith.truncf %19 : vector<2x32xf32> to vector<2x32xbf16>
    %cst_19 = arith.constant dense<0.000000e+00> : vector<2x32xf32>
    %21 = tpu.matmul %20, %7, %cst_19 {dimension_numbers = #tpu.dot_dimension_numbers<[1], [0], [0], [1], [0, 0, 1, 1], [], []>} : vector<2x32xbf16>, vector<32x32xbf16>, vector<2x32xf32> -> vector<2x32xf32>
    %22 = vector.extract_strided_slice %18 {offsets = [0, 0], sizes = [3, 8], strides = [1, 1]} : vector<6x8xf32> to vector<3x8xf32>
    %23 = arith.truncf %22 : vector<3x8xf32> to vector<3x8xbf16>
    %cst_20 = arith.constant dense<0.000000e+00> : vector<8x160xf32>
    %24 = tpu.matmul %23, %6, %cst_20 {dimension_numbers = #tpu.dot_dimension_numbers<[0], [0], [1], [1], [0, 1, 1, 1], [], []>} : vector<3x8xbf16>, vector<3x160xbf16>, vector<8x160xf32> -> vector<8x160xf32>
    %25 = vector.extract_strided_slice %24 {offsets = [0, 0], sizes = [8, 128], strides = [1, 1]} : vector<8x160xf32> to vector<8x128xf32>
    %26 = vector.extract_strided_slice %24 {offsets = [0, 128], sizes = [8, 32], strides = [1, 1]} : vector<8x160xf32> to vector<8x32xf32>
    %27 = vector.extract_strided_slice %21 {offsets = [0, 0], sizes = [1, 32], strides = [1, 1]} : vector<2x32xf32> to vector<1x32xf32>
    %28 = vector.broadcast %27 : vector<1x32xf32> to vector<8x32xf32>
    %29 = arith.addf %26, %28 : vector<8x32xf32>
    %30 = vector.extract_strided_slice %18 {offsets = [3, 0], sizes = [3, 8], strides = [1, 1]} : vector<6x8xf32> to vector<3x8xf32>
    %31 = arith.truncf %30 : vector<3x8xf32> to vector<3x8xbf16>
    %cst_21 = arith.constant dense<0.000000e+00> : vector<8x160xf32>
    %32 = tpu.matmul %31, %6, %cst_21 {dimension_numbers = #tpu.dot_dimension_numbers<[0], [0], [1], [1], [0, 1, 1, 1], [], []>} : vector<3x8xbf16>, vector<3x160xbf16>, vector<8x160xf32> -> vector<8x160xf32>
    %33 = vector.extract_strided_slice %32 {offsets = [0, 0], sizes = [8, 128], strides = [1, 1]} : vector<8x160xf32> to vector<8x128xf32>
    %34 = vector.extract_strided_slice %32 {offsets = [0, 128], sizes = [8, 32], strides = [1, 1]} : vector<8x160xf32> to vector<8x32xf32>
    %35 = vector.extract_strided_slice %21 {offsets = [1, 0], sizes = [1, 32], strides = [1, 1]} : vector<2x32xf32> to vector<1x32xf32>
    %36 = vector.broadcast %35 : vector<1x32xf32> to vector<8x32xf32>
    %37 = arith.addf %34, %36 : vector<8x32xf32>
    %38 = tpu.concatenate %25, %33 in 0 : vector<8x128xf32>, vector<8x128xf32> -> vector<16x128xf32>
    %39 = tpu.concatenate %29, %37 in 0 : vector<8x32xf32>, vector<8x32xf32> -> vector<16x32xf32>
    %40 = arith.mulf %39, %39 : vector<16x32xf32>
    %cst_22 = arith.constant dense<0.000000e+00> : vector<16xf32>
    %41 = vector.multi_reduction <add>, %40, %cst_22 [1] : vector<16x32xf32> to vector<16xf32>
    %42 = vector.shape_cast %41 : vector<16xf32> to vector<16x1xf32>
    %cst_23 = arith.constant 9.99999996E-13 : f32
    %43 = vector.broadcast %cst_23 : f32 to vector<16x1xf32>
    %44 = arith.addf %42, %43 : vector<16x1xf32>
    %45 = math.rsqrt %44 : vector<16x1xf32>
    %46 = vector.broadcast %45 : vector<16x1xf32> to vector<16x32xf32>
    %47 = arith.mulf %39, %46 : vector<16x32xf32>
    %48 = arith.truncf %47 : vector<16x32xf32> to vector<16x32xbf16>
    %cst_24 = arith.constant dense<0.000000e+00> : vector<16x6xf32>
    %49 = tpu.matmul %48, %8, %cst_24 {dimension_numbers = #tpu.dot_dimension_numbers<[1], [0], [0], [1], [0, 0, 1, 1], [], []>} : vector<16x32xbf16>, vector<32x6xbf16>, vector<16x6xf32> -> vector<16x6xf32>
    %cst_25 = arith.constant dense<0xFF800000> : vector<16xf32>
    %50 = vector.multi_reduction <maximumf>, %49, %cst_25 [1] : vector<16x6xf32> to vector<16xf32>
    %51 = vector.shape_cast %50 : vector<16xf32> to vector<16x1xf32>
    %52 = vector.broadcast %51 : vector<16x1xf32> to vector<16x6xf32>
    %53 = arith.subf %49, %52 : vector<16x6xf32>
    %54 = math.exp %53 : vector<16x6xf32>
    %55 = vector.extract_strided_slice %54 {offsets = [0, 4], sizes = [16, 1], strides = [1, 1]} : vector<16x6xf32> to vector<16x1xf32>
    %cst_26 = arith.constant dense<0.000000e+00> : vector<16xf32>
    %56 = vector.multi_reduction <add>, %54, %cst_26 [1] : vector<16x6xf32> to vector<16xf32>
    %57 = vector.shape_cast %56 : vector<16xf32> to vector<16x1xf32>
    %58 = tpu.reciprocal %57 {approx = true} : vector<16x1xf32> -> vector<16x1xf32>
    %59 = arith.mulf %55, %58 : vector<16x1xf32>
    %60 = arith.negf %38 : vector<16x128xf32>
    %61 = math.exp %60 : vector<16x128xf32>
    %cst_27 = arith.constant 1.000000e+00 : f32
    %62 = vector.broadcast %cst_27 : f32 to vector<16x128xf32>
    %63 = arith.addf %62, %61 : vector<16x128xf32>
    %64 = arith.divf %62, %63 : vector<16x128xf32>
    %65 = vector.broadcast %59 : vector<16x1xf32> to vector<16x128xf32>
    %66 = arith.mulf %65, %64 : vector<16x128xf32>
    %67 = vector.extract_strided_slice %66 {offsets = [0, 0], sizes = [8, 128], strides = [1, 1]} : vector<16x128xf32> to vector<8x128xf32>
    %cst_28 = arith.constant dense<0.000000e+00> : vector<128xf32>
    %68 = vector.multi_reduction <add>, %67, %cst_28 [0] : vector<8x128xf32> to vector<128xf32>
    %69 = vector.shape_cast %68 : vector<128xf32> to vector<1x128xf32>
    %70 = vector.extract_strided_slice %66 {offsets = [8, 0], sizes = [8, 128], strides = [1, 1]} : vector<16x128xf32> to vector<8x128xf32>
    %cst_29 = arith.constant dense<0.000000e+00> : vector<128xf32>
    %71 = vector.multi_reduction <add>, %70, %cst_29 [0] : vector<8x128xf32> to vector<128xf32>
    %72 = vector.shape_cast %71 : vector<128xf32> to vector<1x128xf32>
    %73 = tpu.concatenate %69, %72 in 0 : vector<1x128xf32>, vector<1x128xf32> -> vector<2x128xf32>
    %74 = vector.extract_strided_slice %73 {offsets = [0, 0], sizes = [2, 64], strides = [1, 1]} : vector<2x128xf32> to vector<2x64xf32>
    %75 = vector.extract_strided_slice %73 {offsets = [0, 64], sizes = [2, 64], strides = [1, 1]} : vector<2x128xf32> to vector<2x64xf32>
    %76 = tpu.concatenate %74, %75 in 0 : vector<2x64xf32>, vector<2x64xf32> -> vector<4x64xf32>
    %77 = arith.truncf %76 : vector<4x64xf32> to vector<4x64xbf16>
    %c0_30 = arith.constant 0 : index
    %c0_31 = arith.constant 0 : index
    %78 = vector.load %arg7[%c0_30, %c0_31] : memref<64x1024xbf16, #tpu.memory_space<vmem>>, vector<64x1024xbf16>
    %cst_32 = arith.constant dense<0.000000e+00> : vector<4x1024xf32>
    %79 = tpu.matmul %77, %78, %cst_32 {dimension_numbers = #tpu.dot_dimension_numbers<[1], [0], [0], [1], [0, 0, 1, 1], [], []>} : vector<4x64xbf16>, vector<64x1024xbf16>, vector<4x1024xf32> -> vector<4x1024xf32>
    %80 = vector.extract_strided_slice %79 {offsets = [0, 0], sizes = [2, 1024], strides = [1, 1]} : vector<4x1024xf32> to vector<2x1024xf32>
    %81 = vector.extract_strided_slice %79 {offsets = [2, 0], sizes = [2, 1024], strides = [1, 1]} : vector<4x1024xf32> to vector<2x1024xf32>
    %cst_33 = arith.constant 0.00392156886 : f32
    %82 = vector.broadcast %cst_33 : f32 to vector<2x1024xf32>
    %83 = arith.mulf %81, %82 : vector<2x1024xf32>
    %cst_34 = arith.constant 0.000000e+00 : f32
    %84 = vector.broadcast %cst_34 : f32 to vector<2x1024xf32>
    %85 = arith.cmpf ogt, %80, %84 : vector<2x1024xf32>
    %86 = arith.extui %85 : vector<2x1024xi1> to vector<2x1024xi32>
    %87 = arith.sitofp %86 : vector<2x1024xi32> to vector<2x1024xf32>
    %88 = arith.mulf %83, %87 : vector<2x1024xf32>
    %89 = vector.extract_strided_slice %88 {offsets = [0, 0], sizes = [1, 1024], strides = [1, 1]} : vector<2x1024xf32> to vector<1x1024xf32>
    %90 = vector.shape_cast %89 : vector<1x1024xf32> to vector<1x1024xf32>
    %91 = vector.broadcast %90 : vector<1x1024xf32> to vector<3x1024xf32>
    %92 = vector.extract_strided_slice %88 {offsets = [1, 0], sizes = [1, 1024], strides = [1, 1]} : vector<2x1024xf32> to vector<1x1024xf32>
    %93 = vector.shape_cast %92 : vector<1x1024xf32> to vector<1x1024xf32>
    %94 = vector.broadcast %93 : vector<1x1024xf32> to vector<3x1024xf32>
    %95 = tpu.concatenate %91, %94 in 0 : vector<3x1024xf32>, vector<3x1024xf32> -> vector<6x1024xf32>
    %96 = arith.mulf %13, %95 : vector<6x1024xf32>
    %c0_35 = arith.constant 0 : index
    %c0_36 = arith.constant 0 : index
    %97 = vector.load %arg9[%c0_35, %c0_36] : memref<6x1024xf32, #tpu.memory_space<vmem>>, vector<6x1024xf32>
    tpu.vector_store %arg9[%c0_35, %c0_36], %96 {strides = array<i32>} : memref<6x1024xf32, #tpu.memory_space<vmem>>, vector<6x1024xf32>,
    %cst_37 = arith.constant dense<0.000000e+00> : vector<6xf32>
    %98 = vector.multi_reduction <add>, %96, %cst_37 [1] : vector<6x1024xf32> to vector<6xf32>
    %99 = vector.shape_cast %98 : vector<6xf32> to vector<6x1xf32>
    %cst_38 = arith.constant 1.024000e+03 : f32
    %100 = vector.broadcast %cst_38 : f32 to vector<6x1xf32>
    %101 = arith.divf %99, %100 : vector<6x1xf32>
    %c0_39 = arith.constant 0 : index
    %c0_40 = arith.constant 0 : index
    %102 = vector.load %arg2[%c0_39, %c0_40] : memref<6x1024xf32, #tpu.memory_space<vmem>>, vector<6x1024xf32>
    %cst_41 = arith.constant dense<0.000000e+00> : vector<6xf32>
    %103 = vector.multi_reduction <add>, %102, %cst_41 [1] : vector<6x1024xf32> to vector<6xf32>
    %104 = vector.shape_cast %103 : vector<6xf32> to vector<6x1xf32>
    %cst_42 = arith.constant 1.024000e+03 : f32
    %105 = vector.broadcast %cst_42 : f32 to vector<6x1xf32>
    %106 = arith.divf %104, %105 : vector<6x1xf32>
    %107 = arith.subf %106, %0 : vector<6x1xf32>
    %108 = arith.mulf %107, %1 : vector<6x1xf32>
    %109 = vector.extract_strided_slice %101 {offsets = [0, 0], sizes = [3, 1], strides = [1, 1]} : vector<6x1xf32> to vector<3x1xf32>
    %110 = vector.broadcast %109 : vector<3x1xf32> to vector<3x5xf32>
    %111 = arith.mulf %110, %2 : vector<3x5xf32>
    %cst_43 = arith.constant dense<0.000000e+00> : vector<5xf32>
    %112 = vector.multi_reduction <add>, %111, %cst_43 [0] : vector<3x5xf32> to vector<5xf32>
    %113 = vector.shape_cast %112 : vector<5xf32> to vector<1x5xf32>
    %114 = vector.extract_strided_slice %108 {offsets = [0, 0], sizes = [3, 1], strides = [1, 1]} : vector<6x1xf32> to vector<3x1xf32>
    %115 = vector.broadcast %114 : vector<3x1xf32> to vector<3x5xf32>
    %116 = arith.mulf %115, %3 : vector<3x5xf32>
    %cst_44 = arith.constant dense<0.000000e+00> : vector<5xf32>
    %117 = vector.multi_reduction <add>, %116, %cst_44 [0] : vector<3x5xf32> to vector<5xf32>
    %118 = vector.shape_cast %117 : vector<5xf32> to vector<1x5xf32>
    %119 = arith.addf %113, %118 : vector<1x5xf32>
    %120 = vector.extract_strided_slice %101 {offsets = [3, 0], sizes = [3, 1], strides = [1, 1]} : vector<6x1xf32> to vector<3x1xf32>
    %121 = vector.broadcast %120 : vector<3x1xf32> to vector<3x5xf32>
    %122 = arith.mulf %121, %2 : vector<3x5xf32>
    %cst_45 = arith.constant dense<0.000000e+00> : vector<5xf32>
    %123 = vector.multi_reduction <add>, %122, %cst_45 [0] : vector<3x5xf32> to vector<5xf32>
    %124 = vector.shape_cast %123 : vector<5xf32> to vector<1x5xf32>
    %125 = vector.extract_strided_slice %108 {offsets = [3, 0], sizes = [3, 1], strides = [1, 1]} : vector<6x1xf32> to vector<3x1xf32>
    %126 = vector.broadcast %125 : vector<3x1xf32> to vector<3x5xf32>
    %127 = arith.mulf %126, %3 : vector<3x5xf32>
    %cst_46 = arith.constant dense<0.000000e+00> : vector<5xf32>
    %128 = vector.multi_reduction <add>, %127, %cst_46 [0] : vector<3x5xf32> to vector<5xf32>
    %129 = vector.shape_cast %128 : vector<5xf32> to vector<1x5xf32>
    %130 = arith.addf %124, %129 : vector<1x5xf32>
    %131 = tpu.concatenate %119, %130 in 0 : vector<1x5xf32>, vector<1x5xf32> -> vector<2x5xf32>
    %cst_47 = arith.constant dense<0.000000e+00> : vector<2x5xf32>
    %132 = tpu.matmul %19, %4, %cst_47 {dimension_numbers = #tpu.dot_dimension_numbers<[1], [0], [0], [1], [0, 0, 1, 1], [], []>} : vector<2x32xf32>, vector<32x5xf32>, vector<2x5xf32> -> vector<2x5xf32>
    %133 = arith.addf %131, %132 : vector<2x5xf32>
    %c0_48 = arith.constant 0 : index
    %c0_49 = arith.constant 0 : index
    %134 = vector.load %arg8[%c0_48, %c0_49] : memref<40x128xf32, #tpu.memory_space<vmem>>, vector<16x128xf32>
    tpu.vector_store %arg8[%c0_48, %c0_49], %38 {strides = array<i32>} : memref<40x128xf32, #tpu.memory_space<vmem>>, vector<16x128xf32>,
    %cst_50 = arith.constant 0.000000e+00 : f32
    %135 = vector.broadcast %cst_50 : f32 to vector<16x128xf32>
    %c16_51 = arith.constant 16 : index
    %c0_52 = arith.constant 0 : index
    %136 = vector.load %arg8[%c16_51, %c0_52] : memref<40x128xf32, #tpu.memory_space<vmem>>, vector<16x128xf32>
    tpu.vector_store %arg8[%c16_51, %c0_52], %135 {strides = array<i32>} : memref<40x128xf32, #tpu.memory_space<vmem>>, vector<16x128xf32>,
    %c16_53 = arith.constant 16 : index
    %c0_54 = arith.constant 0 : index
    %137 = vector.load %arg8[%c16_53, %c0_54] : memref<40x128xf32, #tpu.memory_space<vmem>>, vector<16x6xf32>
    tpu.vector_store %arg8[%c16_53, %c0_54], %49 {strides = array<i32>} : memref<40x128xf32, #tpu.memory_space<vmem>>, vector<16x6xf32>,
    %cst_55 = arith.constant 0.000000e+00 : f32
    %138 = vector.broadcast %cst_55 : f32 to vector<8x128xf32>
    %c32_56 = arith.constant 32 : index
    %c0_57 = arith.constant 0 : index
    %139 = vector.load %arg8[%c32_56, %c0_57] : memref<40x128xf32, #tpu.memory_space<vmem>>, vector<8x128xf32>
    tpu.vector_store %arg8[%c32_56, %c0_57], %138 {strides = array<i32>} : memref<40x128xf32, #tpu.memory_space<vmem>>, vector<8x128xf32>,
    %c32_58 = arith.constant 32 : index
    %c0_59 = arith.constant 0 : index
    %140 = vector.load %arg8[%c32_58, %c0_59] : memref<40x128xf32, #tpu.memory_space<vmem>>, vector<2x5xf32>
    tpu.vector_store %arg8[%c32_58, %c0_59], %133 {strides = array<i32>} : memref<40x128xf32, #tpu.memory_space<vmem>>, vector<2x5xf32>,
    return
  }
  func.func @transform_0(%arg0: i32) -> (i32, i32) {
    %c0_i32 = arith.constant 0 : i32
    %c0_i32_0 = arith.constant 0 : i32
    %c0_i32_1 = arith.constant 0 : i32
    return %c0_i32, %c0_i32_0 : i32, i32
  }
  func.func @transform_1(%arg0: i32) -> (i32, i32) {
    %c0_i32 = arith.constant 0 : i32
    %c0_i32_0 = arith.constant 0 : i32
    %c0_i32_1 = arith.constant 0 : i32
    return %c0_i32, %c0_i32_0 : i32, i32
  }
  func.func @transform_2(%arg0: i32) -> (i32, i32) {
    %c0_i32 = arith.constant 0 : i32
    %c0_i32_0 = arith.constant 0 : i32
    %c0_i32_1 = arith.constant 0 : i32
    return %c0_i32, %c0_i32_0 : i32, i32
  }
  func.func @transform_3(%arg0: i32) -> (i32, i32) {
    %c0_i32 = arith.constant 0 : i32
    %c0_i32_0 = arith.constant 0 : i32
    %c0_i32_1 = arith.constant 0 : i32
    return %c0_i32, %c0_i32_0 : i32, i32
  }
  func.func @transform_4(%arg0: i32) -> (i32, i32) {
    %c0_i32 = arith.constant 0 : i32
    %c0_i32_0 = arith.constant 0 : i32
    %c0_i32_1 = arith.constant 0 : i32
    return %c0_i32, %c0_i32_0 : i32, i32
  }
  func.func @transform_5(%arg0: i32) -> (i32, i32) {
    %c0_i32 = arith.constant 0 : i32
    %c0_i32_0 = arith.constant 0 : i32
    %c0_i32_1 = arith.constant 0 : i32
    return %c0_i32, %c0_i32_0 : i32, i32
  }
  func.func @transform_6(%arg0: i32) -> (i32, i32) {
    %c0_i32 = arith.constant 0 : i32
    %c0_i32_0 = arith.constant 0 : i32
    %c0_i32_1 = arith.constant 0 : i32
    return %c0_i32, %c0_i32_0 : i32, i32
  }
  func.func @transform_7(%arg0: i32) -> (i32, i32) {
    %c0_i32 = arith.constant 0 : i32
    %c0_i32_0 = arith.constant 0 : i32
    %c0_i32_1 = arith.constant 0 : i32
    return %c0_i32, %c0_i32_0 : i32, i32
  }
  func.func @transform_8(%arg0: i32) -> (i32, i32) {
    %c0_i32 = arith.constant 0 : i32
    %c0_i32_0 = arith.constant 0 : i32
    %c0_i32_1 = arith.constant 0 : i32
    return %c0_i32, %c0_i32_0 : i32, i32
  }
}

</mosaic_0001>

<llo_original>
// kernel: forward.1
$region0: #{forward.1}
  #allocation0 [shape = 'u32[]', space=smem, size = 0x4, offset = 0x4, fixed_abs, tag = 'smem constant byte address 0x4 - core index']
  #allocation1 [shape = 'u32[144,128]{1,0:T(1,128)}', space=vmem, size = 0x12000, scoped, tag = 'internal scratch']
  %s0 = inlined_call_operand.vmem [shape: f32[6,1024], index: 0, kind: input, shape index: {}]
  %s1 = inlined_call_operand.vmem [shape: f32[6,1024], index: 1, kind: input, shape index: {}]
  %s2 = inlined_call_operand.vmem [shape: f32[2,32], index: 2, kind: input, shape index: {}]
  %s3 = inlined_call_operand.vmem [shape: f32[56,128], index: 3, kind: input, shape index: {}]
  %s4 = inlined_call_operand.vmem [shape: bf16[48,160], index: 4, kind: input, shape index: {}]
  %s5 = inlined_call_operand.vmem [shape: bf16[1024,32], index: 5, kind: input, shape index: {}]
  %s6 = inlined_call_operand.vmem [shape: bf16[64,1024], index: 6, kind: input, shape index: {}]
  %s7 = inlined_call_operand.vmem [shape: f32[40,128], index: 7, kind: output, shape index: {0}]
  %s8 = inlined_call_operand.vmem [shape: f32[6,1024], index: 8, kind: output, shape index: {1}]
  %9 = xla_tuple %s7, %s8
  %s10 = sld [smem:[#allocation0]]
  $region46: #{forward.1} parent=0
    _
  %s12 = ssub.s32 1, %s10
  %s13 = scalar_select 0, %s12, %s10
  // Predicated region
  $region2: #{forward.1} parent=0 // pred_check
    _
  $region3: #{forward.1} parent=0 // pred_check_branch
    %15 = sbr.rel (0) target = $region5
  $region4: #{forward.1} parent=0 // pred_region
    _
  $region5: #{forward.1} parent=0 // pred_fallthru
    _
  // Predicated region
  $region6: #{forward.1} parent=0 // pred_check
    _
  $region7: #{forward.1} parent=0 // pred_check_branch
    %17 = sbr.rel (0) target = $region9
  $region8: #{forward.1} parent=0 // pred_region
    _
  $region9: #{forward.1} parent=0 // pred_fallthru
    _
  // Predicated region
  $region10: #{forward.1} parent=0 // pred_check
    _
  $region11: #{forward.1} parent=0 // pred_check_branch
    %19 = sbr.rel (0) target = $region13
  $region12: #{forward.1} parent=0 // pred_region
    _
  $region13: #{forward.1} parent=0 // pred_fallthru
    _
  // Predicated region
  $region14: #{forward.1} parent=0 // pred_check
    _
  $region15: #{forward.1} parent=0 // pred_check_branch
    %21 = sbr.rel (0) target = $region17
  $region16: #{forward.1} parent=0 // pred_region
    _
  $region17: #{forward.1} parent=0 // pred_fallthru
    _
  // Predicated region
  $region18: #{forward.1} parent=0 // pred_check
    _
  $region19: #{forward.1} parent=0 // pred_check_branch
    %23 = sbr.rel (0) target = $region21
  $region20: #{forward.1} parent=0 // pred_region
    _
  $region21: #{forward.1} parent=0 // pred_fallthru
    _
  // Predicated region
  $region22: #{forward.1} parent=0 // pred_check
    _
  $region23: #{forward.1} parent=0 // pred_check_branch
    %25 = sbr.rel (0) target = $region25
  $region24: #{forward.1} parent=0 // pred_region
    _
  $region25: #{forward.1} parent=0 // pred_fallthru
    _
  // Predicated region
  $region26: #{forward.1} parent=0 // pred_check
    _
  $region27: #{forward.1} parent=0 // pred_check_branch
    %27 = sbr.rel (0) target = $region29
  $region28: #{forward.1} parent=0 // pred_region
    _
  $region29: #{forward.1} parent=0 // pred_fallthru
    _
  %v29 = vld [vmem:[%s3] sm:$0x3f]
  %v30 = vld [vmem:[%s3 + $0x8] sm:$0x7]
  %v31 = vld [vmem:[%s3 + $0x10] sm:$0x7]
  %v32 = vld [vmem:[%s3 + $0x18] sm:$0xff]
  %v33 = vld [vmem:[%s3 + $0x20] sm:$0xff]
  %v34 = vld [vmem:[%s3 + $0x28] sm:$0xff]
  %v35 = vld [vmem:[%s3 + $0x30] sm:$0xff]
  %v36 = vld [vmem:[%s4] sm:$0xf]
  %v37 = vld [vmem:[%s4 + $0x8] sm:$0x33]
  %v38 = vld [vmem:[%s4 + $0x10] sm:$0xf]
  %v39 = vld [vmem:[%s4 + $0x18] sm:$0xf]
  %v40 = vld [vmem:[%s4 + $0x20] sm:$0xf]
  %v41 = vld [vmem:[%s4 + $0x28] sm:$0xf]
  %v42 = vld [vmem:[%s0] sm:$0x3f]
  %v43 = vld [vmem:[%s0 + $0x8] sm:$0x3f]
  %v44 = vld [vmem:[%s0 + $0x10] sm:$0x3f]
  %v45 = vld [vmem:[%s0 + $0x18] sm:$0x3f]
  %v46 = vld [vmem:[%s0 + $0x20] sm:$0x3f]
  %v47 = vld [vmem:[%s0 + $0x28] sm:$0x3f]
  %v48 = vld [vmem:[%s0 + $0x30] sm:$0x3f]
  %v49 = vld [vmem:[%s0 + $0x38] sm:$0x3f]
  %51 = vset.pattern.permute.xlu0 0
  %52 = vperm.xlu0 %51, %v29
  %v53 = vpop.permute.xlu0 %52
  %v55 = vsub.f32 %v42, %v53
  %v56 = vsub.f32 %v43, %v53
  %v57 = vsub.f32 %v44, %v53
  %v58 = vsub.f32 %v45, %v53
  %v59 = vsub.f32 %v46, %v53
  %v60 = vsub.f32 %v47, %v53
  %v61 = vsub.f32 %v48, %v53
  %v62 = vsub.f32 %v49, %v53
  %63 = vset.pattern.permute.xlu0 1
  %64 = vperm.xlu0 %63, %v29
  %v65 = vpop.permute.xlu0 %64
  %v67 = vmul.f32 %v55, %v65
  %v68 = vmul.f32 %v56, %v65
  %v69 = vmul.f32 %v57, %v65
  %v70 = vmul.f32 %v58, %v65
  %v71 = vmul.f32 %v59, %v65
  %v72 = vmul.f32 %v60, %v65
  %v73 = vmul.f32 %v61, %v65
  %v74 = vmul.f32 %v62, %v65
  %v75 = vpack.c.bf16 %v67, %v67
  %v76 = vpack.c.bf16 %v68, %v68
  %v77 = vpack.c.bf16 %v69, %v69
  %v78 = vpack.c.bf16 %v70, %v70
  %v79 = vpack.c.bf16 %v71, %v71
  %v80 = vpack.c.bf16 %v72, %v72
  %v81 = vpack.c.bf16 %v73, %v73
  %v82 = vpack.c.bf16 %v74, %v74
  %v83 = vld [vmem:[%s5] sm:$0xf]
  %v84 = vld [vmem:[%s5 + $0x4] sm:$0xf]
  %v85 = vld [vmem:[%s5 + $0x8] sm:$0xf]
  %v86 = vld [vmem:[%s5 + $0xc] sm:$0xf]
  %v87 = vld [vmem:[%s5 + $0x10] sm:$0xf]
  %v88 = vld [vmem:[%s5 + $0x14] sm:$0xf]
  %v89 = vld [vmem:[%s5 + $0x18] sm:$0xf]
  %v90 = vld [vmem:[%s5 + $0x1c] sm:$0xf]
  %v91 = vld [vmem:[%s5 + $0x20] sm:$0xf]
  %v92 = vld [vmem:[%s5 + $0x24] sm:$0xf]
  %v93 = vld [vmem:[%s5 + $0x28] sm:$0xf]
  %v94 = vld [vmem:[%s5 + $0x2c] sm:$0xf]
  %v95 = vld [vmem:[%s5 + $0x30] sm:$0xf]
  %v96 = vld [vmem:[%s5 + $0x34] sm:$0xf]
  %v97 = vld [vmem:[%s5 + $0x38] sm:$0xf]
  %v98 = vld [vmem:[%s5 + $0x3c] sm:$0xf]
  %v99 = vld [vmem:[%s5 + $0x40] sm:$0xf]
  %v100 = vld [vmem:[%s5 + $0x44] sm:$0xf]
  %v101 = vld [vmem:[%s5 + $0x48] sm:$0xf]
  %v102 = vld [vmem:[%s5 + $0x4c] sm:$0xf]
  %v103 = vld [vmem:[%s5 + $0x50] sm:$0xf]
  %v104 = vld [vmem:[%s5 + $0x54] sm:$0xf]
  %v105 = vld [vmem:[%s5 + $0x58] sm:$0xf]
  %v106 = vld [vmem:[%s5 + $0x5c] sm:$0xf]
  %v107 = vld [vmem:[%s5 + $0x60] sm:$0xf]
  %v108 = vld [vmem:[%s5 + $0x64] sm:$0xf]
  %v109 = vld [vmem:[%s5 + $0x68] sm:$0xf]
  %v110 = vld [vmem:[%s5 + $0x6c] sm:$0xf]
  %v111 = vld [vmem:[%s5 + $0x70] sm:$0xf]
  %v112 = vld [vmem:[%s5 + $0x74] sm:$0xf]
  %v113 = vld [vmem:[%s5 + $0x78] sm:$0xf]
  %v114 = vld [vmem:[%s5 + $0x7c] sm:$0xf]
  %v115 = vld [vmem:[%s5 + $0x80] sm:$0xf]
  %v116 = vld [vmem:[%s5 + $0x84] sm:$0xf]
  %v117 = vld [vmem:[%s5 + $0x88] sm:$0xf]
  %v118 = vld [vmem:[%s5 + $0x8c] sm:$0xf]
  %v119 = vld [vmem:[%s5 + $0x90] sm:$0xf]
  %v120 = vld [vmem:[%s5 + $0x94] sm:$0xf]
  %v121 = vld [vmem:[%s5 + $0x98] sm:$0xf]
  %v122 = vld [vmem:[%s5 + $0x9c] sm:$0xf]
  %v123 = vld [vmem:[%s5 + $0xa0] sm:$0xf]
  %v124 = vld [vmem:[%s5 + $0xa4] sm:$0xf]
  %v125 = vld [vmem:[%s5 + $0xa8] sm:$0xf]
  %v126 = vld [vmem:[%s5 + $0xac] sm:$0xf]
  %v127 = vld [vmem:[%s5 + $0xb0] sm:$0xf]
  %v128 = vld [vmem:[%s5 + $0xb4] sm:$0xf]
  %v129 = vld [vmem:[%s5 + $0xb8] sm:$0xf]
  %v130 = vld [vmem:[%s5 + $0xbc] sm:$0xf]
  %v131 = vld [vmem:[%s5 + $0xc0] sm:$0xf]
  %v132 = vld [vmem:[%s5 + $0xc4] sm:$0xf]
  %v133 = vld [vmem:[%s5 + $0xc8] sm:$0xf]
  %v134 = vld [vmem:[%s5 + $0xcc] sm:$0xf]
  %v135 = vld [vmem:[%s5 + $0xd0] sm:$0xf]
  %v136 = vld [vmem:[%s5 + $0xd4] sm:$0xf]
  %v137 = vld [vmem:[%s5 + $0xd8] sm:$0xf]
  %v138 = vld [vmem:[%s5 + $0xdc] sm:$0xf]
  %v139 = vld [vmem:[%s5 + $0xe0] sm:$0xf]
  %v140 = vld [vmem:[%s5 + $0xe4] sm:$0xf]
  %v141 = vld [vmem:[%s5 + $0xe8] sm:$0xf]
  %v142 = vld [vmem:[%s5 + $0xec] sm:$0xf]
  %v143 = vld [vmem:[%s5 + $0xf0] sm:$0xf]
  %v144 = vld [vmem:[%s5 + $0xf4] sm:$0xf]
  %v145 = vld [vmem:[%s5 + $0xf8] sm:$0xf]
  %v146 = vld [vmem:[%s5 + $0xfc] sm:$0xf]
  %v147 = vld [vmem:[%s5 + $0x100] sm:$0xf]
  %v148 = vld [vmem:[%s5 + $0x104] sm:$0xf]
  %v149 = vld [vmem:[%s5 + $0x108] sm:$0xf]
  %v150 = vld [vmem:[%s5 + $0x10c] sm:$0xf]
  %v151 = vld [vmem:[%s5 + $0x110] sm:$0xf]
  %v152 = vld [vmem:[%s5 + $0x114] sm:$0xf]
  %v153 = vld [vmem:[%s5 + $0x118] sm:$0xf]
  %v154 = vld [vmem:[%s5 + $0x11c] sm:$0xf]
  %v155 = vld [vmem:[%s5 + $0x120] sm:$0xf]
  %v156 = vld [vmem:[%s5 + $0x124] sm:$0xf]
  %v157 = vld [vmem:[%s5 + $0x128] sm:$0xf]
  %v158 = vld [vmem:[%s5 + $0x12c] sm:$0xf]
  %v159 = vld [vmem:[%s5 + $0x130] sm:$0xf]
  %v160 = vld [vmem:[%s5 + $0x134] sm:$0xf]
  %v161 = vld [vmem:[%s5 + $0x138] sm:$0xf]
  %v162 = vld [vmem:[%s5 + $0x13c] sm:$0xf]
  %v163 = vld [vmem:[%s5 + $0x140] sm:$0xf]
  %v164 = vld [vmem:[%s5 + $0x144] sm:$0xf]
  %v165 = vld [vmem:[%s5 + $0x148] sm:$0xf]
  %v166 = vld [vmem:[%s5 + $0x14c] sm:$0xf]
  %v167 = vld [vmem:[%s5 + $0x150] sm:$0xf]
  %v168 = vld [vmem:[%s5 + $0x154] sm:$0xf]
  %v169 = vld [vmem:[%s5 + $0x158] sm:$0xf]
  %v170 = vld [vmem:[%s5 + $0x15c] sm:$0xf]
  %v171 = vld [vmem:[%s5 + $0x160] sm:$0xf]
  %v172 = vld [vmem:[%s5 + $0x164] sm:$0xf]
  %v173 = vld [vmem:[%s5 + $0x168] sm:$0xf]
  %v174 = vld [vmem:[%s5 + $0x16c] sm:$0xf]
  %v175 = vld [vmem:[%s5 + $0x170] sm:$0xf]
  %v176 = vld [vmem:[%s5 + $0x174] sm:$0xf]
  %v177 = vld [vmem:[%s5 + $0x178] sm:$0xf]
  %v178 = vld [vmem:[%s5 + $0x17c] sm:$0xf]
  %v179 = vld [vmem:[%s5 + $0x180] sm:$0xf]
  %v180 = vld [vmem:[%s5 + $0x184] sm:$0xf]
  %v181 = vld [vmem:[%s5 + $0x188] sm:$0xf]
  %v182 = vld [vmem:[%s5 + $0x18c] sm:$0xf]
  %v183 = vld [vmem:[%s5 + $0x190] sm:$0xf]
  %v184 = vld [vmem:[%s5 + $0x194] sm:$0xf]
  %v185 = vld [vmem:[%s5 + $0x198] sm:$0xf]
  %v186 = vld [vmem:[%s5 + $0x19c] sm:$0xf]
  %v187 = vld [vmem:[%s5 + $0x1a0] sm:$0xf]
  %v188 = vld [vmem:[%s5 + $0x1a4] sm:$0xf]
  %v189 = vld [vmem:[%s5 + $0x1a8] sm:$0xf]
  %v190 = vld [vmem:[%s5 + $0x1ac] sm:$0xf]
  %v191 = vld [vmem:[%s5 + $0x1b0] sm:$0xf]
  %v192 = vld [vmem:[%s5 + $0x1b4] sm:$0xf]
  %v193 = vld [vmem:[%s5 + $0x1b8] sm:$0xf]
  %v194 = vld [vmem:[%s5 + $0x1bc] sm:$0xf]
  %v195 = vld [vmem:[%s5 + $0x1c0] sm:$0xf]
  %v196 = vld [vmem:[%s5 + $0x1c4] sm:$0xf]
  %v197 = vld [vmem:[%s5 + $0x1c8] sm:$0xf]
  %v198 = vld [vmem:[%s5 + $0x1cc] sm:$0xf]
  %v199 = vld [vmem:[%s5 + $0x1d0] sm:$0xf]
  %v200 = vld [vmem:[%s5 + $0x1d4] sm:$0xf]
  %v201 = vld [vmem:[%s5 + $0x1d8] sm:$0xf]
  %v202 = vld [vmem:[%s5 + $0x1dc] sm:$0xf]
  %v203 = vld [vmem:[%s5 + $0x1e0] sm:$0xf]
  %v204 = vld [vmem:[%s5 + $0x1e4] sm:$0xf]
  %v205 = vld [vmem:[%s5 + $0x1e8] sm:$0xf]
  %v206 = vld [vmem:[%s5 + $0x1ec] sm:$0xf]
  %v207 = vld [vmem:[%s5 + $0x1f0] sm:$0xf]
  %v208 = vld [vmem:[%s5 + $0x1f4] sm:$0xf]
  %v209 = vld [vmem:[%s5 + $0x1f8] sm:$0xf]
  %v210 = vld [vmem:[%s5 + $0x1fc] sm:$0xf]
  %v339 = vunpack.c.l.b16 %v83
  %v340 = vunpack.c.l.b16 %v84
  %v341 = vunpack.c.l.b16 %v85
  %v342 = vunpack.c.l.b16 %v86
  %v343 = vunpack.c.l.b16 %v87
  %v344 = vunpack.c.l.b16 %v88
  %v345 = vunpack.c.l.b16 %v89
  %v346 = vunpack.c.l.b16 %v90
  %v347 = vunpack.c.l.b16 %v91
  %v348 = vunpack.c.l.b16 %v92
  %v349 = vunpack.c.l.b16 %v93
  %v350 = vunpack.c.l.b16 %v94
  %v351 = vunpack.c.l.b16 %v95
  %v352 = vunpack.c.l.b16 %v96
  %v353 = vunpack.c.l.b16 %v97
  %v354 = vunpack.c.l.b16 %v98
  %v355 = vunpack.c.l.b16 %v99
  %v356 = vunpack.c.l.b16 %v100
  %v357 = vunpack.c.l.b16 %v101
  %v358 = vunpack.c.l.b16 %v102
  %v359 = vunpack.c.l.b16 %v103
  %v360 = vunpack.c.l.b16 %v104
  %v361 = vunpack.c.l.b16 %v105
  %v362 = vunpack.c.l.b16 %v106
  %v363 = vunpack.c.l.b16 %v107
  %v364 = vunpack.c.l.b16 %v108
  %v365 = vunpack.c.l.b16 %v109
  %v366 = vunpack.c.l.b16 %v110
  %v367 = vunpack.c.l.b16 %v111
  %v368 = vunpack.c.l.b16 %v112
  %v369 = vunpack.c.l.b16 %v113
  %v370 = vunpack.c.l.b16 %v114
  %v371 = vunpack.c.l.b16 %v115
  %v372 = vunpack.c.l.b16 %v116
  %v373 = vunpack.c.l.b16 %v117
  %v374 = vunpack.c.l.b16 %v118
  %v375 = vunpack.c.l.b16 %v119
  %v376 = vunpack.c.l.b16 %v120
  %v377 = vunpack.c.l.b16 %v121
  %v378 = vunpack.c.l.b16 %v122
  %v379 = vunpack.c.l.b16 %v123
  %v380 = vunpack.c.l.b16 %v124
  %v381 = vunpack.c.l.b16 %v125
  %v382 = vunpack.c.l.b16 %v126
  %v383 = vunpack.c.l.b16 %v127
  %v384 = vunpack.c.l.b16 %v128
  %v385 = vunpack.c.l.b16 %v129
  %v386 = vunpack.c.l.b16 %v130
  %v387 = vunpack.c.l.b16 %v131
  %v388 = vunpack.c.l.b16 %v132
  %v389 = vunpack.c.l.b16 %v133
  %v390 = vunpack.c.l.b16 %v134
  %v391 = vunpack.c.l.b16 %v135
  %v392 = vunpack.c.l.b16 %v136
  %v393 = vunpack.c.l.b16 %v137
  %v394 = vunpack.c.l.b16 %v138
  %v395 = vunpack.c.l.b16 %v139
  %v396 = vunpack.c.l.b16 %v140
  %v397 = vunpack.c.l.b16 %v141
  %v398 = vunpack.c.l.b16 %v142
  %v399 = vunpack.c.l.b16 %v143
  %v400 = vunpack.c.l.b16 %v144
  %v401 = vunpack.c.l.b16 %v145
  %v402 = vunpack.c.l.b16 %v146
  %v403 = vunpack.c.l.b16 %v147
  %v404 = vunpack.c.l.b16 %v148
  %v405 = vunpack.c.l.b16 %v149
  %v406 = vunpack.c.l.b16 %v150
  %v407 = vunpack.c.l.b16 %v151
  %v408 = vunpack.c.l.b16 %v152
  %v409 = vunpack.c.l.b16 %v153
  %v410 = vunpack.c.l.b16 %v154
  %v411 = vunpack.c.l.b16 %v155
  %v412 = vunpack.c.l.b16 %v156
  %v413 = vunpack.c.l.b16 %v157
  %v414 = vunpack.c.l.b16 %v158
  %v415 = vunpack.c.l.b16 %v159
  %v416 = vunpack.c.l.b16 %v160
  %v417 = vunpack.c.l.b16 %v161
  %v418 = vunpack.c.l.b16 %v162
  %v419 = vunpack.c.l.b16 %v163
  %v420 = vunpack.c.l.b16 %v164
  %v421 = vunpack.c.l.b16 %v165
  %v422 = vunpack.c.l.b16 %v166
  %v423 = vunpack.c.l.b16 %v167
  %v424 = vunpack.c.l.b16 %v168
  %v425 = vunpack.c.l.b16 %v169
  %v426 = vunpack.c.l.b16 %v170
  %v427 = vunpack.c.l.b16 %v171
  %v428 = vunpack.c.l.b16 %v172
  %v429 = vunpack.c.l.b16 %v173
  %v430 = vunpack.c.l.b16 %v174
  %v431 = vunpack.c.l.b16 %v175
  %v432 = vunpack.c.l.b16 %v176
  %v433 = vunpack.c.l.b16 %v177
  %v434 = vunpack.c.l.b16 %v178
  %v435 = vunpack.c.l.b16 %v179
  %v436 = vunpack.c.l.b16 %v180
  %v437 = vunpack.c.l.b16 %v181
  %v438 = vunpack.c.l.b16 %v182
  %v439 = vunpack.c.l.b16 %v183
  %v440 = vunpack.c.l.b16 %v184
  %v441 = vunpack.c.l.b16 %v185
  %v442 = vunpack.c.l.b16 %v186
  %v443 = vunpack.c.l.b16 %v187
  %v444 = vunpack.c.l.b16 %v188
  %v445 = vunpack.c.l.b16 %v189
  %v446 = vunpack.c.l.b16 %v190
  %v447 = vunpack.c.l.b16 %v191
  %v448 = vunpack.c.l.b16 %v192
  %v449 = vunpack.c.l.b16 %v193
  %v450 = vunpack.c.l.b16 %v194
  %v451 = vunpack.c.l.b16 %v195
  %v452 = vunpack.c.l.b16 %v196
  %v453 = vunpack.c.l.b16 %v197
  %v454 = vunpack.c.l.b16 %v198
  %v455 = vunpack.c.l.b16 %v199
  %v456 = vunpack.c.l.b16 %v200
  %v457 = vunpack.c.l.b16 %v201
  %v458 = vunpack.c.l.b16 %v202
  %v459 = vunpack.c.l.b16 %v203
  %v460 = vunpack.c.l.b16 %v204
  %v461 = vunpack.c.l.b16 %v205
  %v462 = vunpack.c.l.b16 %v206
  %v463 = vunpack.c.l.b16 %v207
  %v464 = vunpack.c.l.b16 %v208
  %v465 = vunpack.c.l.b16 %v209
  %v466 = vunpack.c.l.b16 %v210
  %v467 = vpack.c.b16 %v340, %v339
  %v468 = vpack.c.b16 %v342, %v341
  %v469 = vpack.c.b16 %v344, %v343
  %v470 = vpack.c.b16 %v346, %v345
  %v471 = vpack.c.b16 %v348, %v347
  %v472 = vpack.c.b16 %v350, %v349
  %v473 = vpack.c.b16 %v352, %v351
  %v474 = vpack.c.b16 %v354, %v353
  %v475 = vpack.c.b16 %v356, %v355
  %v476 = vpack.c.b16 %v358, %v357
  %v477 = vpack.c.b16 %v360, %v359
  %v478 = vpack.c.b16 %v362, %v361
  %v479 = vpack.c.b16 %v364, %v363
  %v480 = vpack.c.b16 %v366, %v365
  %v481 = vpack.c.b16 %v368, %v367
  %v482 = vpack.c.b16 %v370, %v369
  %v483 = vpack.c.b16 %v372, %v371
  %v484 = vpack.c.b16 %v374, %v373
  %v485 = vpack.c.b16 %v376, %v375
  %v486 = vpack.c.b16 %v378, %v377
  %v487 = vpack.c.b16 %v380, %v379
  %v488 = vpack.c.b16 %v382, %v381
  %v489 = vpack.c.b16 %v384, %v383
  %v490 = vpack.c.b16 %v386, %v385
  %v491 = vpack.c.b16 %v388, %v387
  %v492 = vpack.c.b16 %v390, %v389
  %v493 = vpack.c.b16 %v392, %v391
  %v494 = vpack.c.b16 %v394, %v393
  %v495 = vpack.c.b16 %v396, %v395
  %v496 = vpack.c.b16 %v398, %v397
  %v497 = vpack.c.b16 %v400, %v399
  %v498 = vpack.c.b16 %v402, %v401
  %v499 = vpack.c.b16 %v404, %v403
  %v500 = vpack.c.b16 %v406, %v405
  %v501 = vpack.c.b16 %v408, %v407
  %v502 = vpack.c.b16 %v410, %v409
  %v503 = vpack.c.b16 %v412, %v411
  %v504 = vpack.c.b16 %v414, %v413
  %v505 = vpack.c.b16 %v416, %v415
  %v506 = vpack.c.b16 %v418, %v417
  %v507 = vpack.c.b16 %v420, %v419
  %v508 = vpack.c.b16 %v422, %v421
  %v509 = vpack.c.b16 %v424, %v423
  %v510 = vpack.c.b16 %v426, %v425
  %v511 = vpack.c.b16 %v428, %v427
  %v512 = vpack.c.b16 %v430, %v429
  %v513 = vpack.c.b16 %v432, %v431
  %v514 = vpack.c.b16 %v434, %v433
  %v515 = vpack.c.b16 %v436, %v435
  %v516 = vpack.c.b16 %v438, %v437
  %v517 = vpack.c.b16 %v440, %v439
  %v518 = vpack.c.b16 %v442, %v441
  %v519 = vpack.c.b16 %v444, %v443
  %v520 = vpack.c.b16 %v446, %v445
  %v521 = vpack.c.b16 %v448, %v447
  %v522 = vpack.c.b16 %v450, %v449
  %v523 = vpack.c.b16 %v452, %v451
  %v524 = vpack.c.b16 %v454, %v453
  %v525 = vpack.c.b16 %v456, %v455
  %v526 = vpack.c.b16 %v458, %v457
  %v527 = vpack.c.b16 %v460, %v459
  %v528 = vpack.c.b16 %v462, %v461
  %v529 = vpack.c.b16 %v464, %v463
  %v530 = vpack.c.b16 %v466, %v465
  %595 = vmatprep.subr.bf16.mxu0 0
  %596 = vmatpush1.bf16.msra.mxu0 %v474
  %597 = vmatprep.subr.bf16.mxu0 0
  %598 = vmatpush1.bf16.msra.mxu0 %v473
  %599 = vmatprep.subr.bf16.mxu0 0
  %600 = vmatpush1.bf16.msra.mxu0 %v472
  %601 = vmatprep.subr.bf16.mxu0 0
  %602 = vmatpush1.bf16.msra.mxu0 %v471
  %603 = vmatprep.subr.bf16.mxu0 0
  %604 = vmatpush1.bf16.msra.mxu0 %v470
  %605 = vmatprep.subr.bf16.mxu0 0
  %606 = vmatpush1.bf16.msra.mxu0 %v469
  %607 = vmatprep.subr.bf16.mxu0 0
  %608 = vmatpush1.bf16.msra.mxu0 %v468
  %609 = vmatprep.subr.bf16.mxu0 0
  %610 = vmatpush1.bf16.msra.mxu0 %v467
  %611 = vmatprep.subr.bf16.mxu0 0
  %612 = vmatpush2.bf16.msra.mxu0 %v482
  %613 = vmatprep.subr.bf16.mxu0 0
  %614 = vmatpush2.bf16.msra.mxu0 %v481
  %615 = vmatprep.subr.bf16.mxu0 0
  %616 = vmatpush2.bf16.msra.mxu0 %v480
  %617 = vmatprep.subr.bf16.mxu0 0
  %618 = vmatpush2.bf16.msra.mxu0 %v479
  %619 = vmatprep.subr.bf16.mxu0 0
  %620 = vmatpush2.bf16.msra.mxu0 %v478
  %621 = vmatprep.subr.bf16.mxu0 0
  %622 = vmatpush2.bf16.msra.mxu0 %v477
  %623 = vmatprep.subr.bf16.mxu0 0
  %624 = vmatpush2.bf16.msra.mxu0 %v476
  %625 = vmatprep.subr.bf16.mxu0 0
  %626 = vmatpush2.bf16.msra.mxu0 %v475
  %627 = vmatprep.mubr.bf16.mxu0 %v76
  %628 = vmatmul.mubr.bf16.gmra.mxu0 %v75
  %v629 = vpop.f32.mrf.mxu0
  %v630 = vadd.f32 0.0, %v629
  %v631 = vpop.f32.mrf.mxu0
  %v632 = vpop.f32.mrf.mxu0
  %v633 = vpop.f32.mrf.mxu0
  %634 = vdwg.mxu0
  %635 = vmatprep.subr.bf16.mxu0 0
  %636 = vmatpush1.bf16.msra.mxu0 %v490
  %637 = vmatprep.subr.bf16.mxu0 0
  %638 = vmatpush1.bf16.msra.mxu0 %v489
  %639 = vmatprep.subr.bf16.mxu0 0
  %640 = vmatpush1.bf16.msra.mxu0 %v488
  %641 = vmatprep.subr.bf16.mxu0 0
  %642 = vmatpush1.bf16.msra.mxu0 %v487
  %643 = vmatprep.subr.bf16.mxu0 0
  %644 = vmatpush1.bf16.msra.mxu0 %v486
  %645 = vmatprep.subr.bf16.mxu0 0
  %646 = vmatpush1.bf16.msra.mxu0 %v485
  %647 = vmatprep.subr.bf16.mxu0 0
  %648 = vmatpush1.bf16.msra.mxu0 %v484
  %649 = vmatprep.subr.bf16.mxu0 0
  %650 = vmatpush1.bf16.msra.mxu0 %v483
  %651 = vmatprep.subr.bf16.mxu0 0
  %652 = vmatpush2.bf16.msra.mxu0 %v498
  %653 = vmatprep.subr.bf16.mxu0 0
  %654 = vmatpush2.bf16.msra.mxu0 %v497
  %655 = vmatprep.subr.bf16.mxu0 0
  %656 = vmatpush2.bf16.msra.mxu0 %v496
  %657 = vmatprep.subr.bf16.mxu0 0
  %658 = vmatpush2.bf16.msra.mxu0 %v495
  %659 = vmatprep.subr.bf16.mxu0 0
  %660 = vmatpush2.bf16.msra.mxu0 %v494
  %661 = vmatprep.subr.bf16.mxu0 0
  %662 = vmatpush2.bf16.msra.mxu0 %v493
  %663 = vmatprep.subr.bf16.mxu0 0
  %664 = vmatpush2.bf16.msra.mxu0 %v492
  %665 = vmatprep.subr.bf16.mxu0 0
  %666 = vmatpush2.bf16.msra.mxu0 %v491
  %667 = vmatprep.mubr.bf16.mxu0 %v78
  %668 = vmatmul.mubr.bf16.gmra.mxu0 %v77
  %v669 = vpop.f32.mrf.mxu0
  %v670 = vadd.f32 %v630, %v669
  %v671 = vpop.f32.mrf.mxu0
  %v672 = vpop.f32.mrf.mxu0
  %v673 = vpop.f32.mrf.mxu0
  %674 = vdwg.mxu0
  %675 = vmatprep.subr.bf16.mxu0 0
  %676 = vmatpush1.bf16.msra.mxu0 %v506
  %677 = vmatprep.subr.bf16.mxu0 0
  %678 = vmatpush1.bf16.msra.mxu0 %v505
  %679 = vmatprep.subr.bf16.mxu0 0
  %680 = vmatpush1.bf16.msra.mxu0 %v504
  %681 = vmatprep.subr.bf16.mxu0 0
  %682 = vmatpush1.bf16.msra.mxu0 %v503
  %683 = vmatprep.subr.bf16.mxu0 0
  %684 = vmatpush1.bf16.msra.mxu0 %v502
  %685 = vmatprep.subr.bf16.mxu0 0
  %686 = vmatpush1.bf16.msra.mxu0 %v501
  %687 = vmatprep.subr.bf16.mxu0 0
  %688 = vmatpush1.bf16.msra.mxu0 %v500
  %689 = vmatprep.subr.bf16.mxu0 0
  %690 = vmatpush1.bf16.msra.mxu0 %v499
  %691 = vmatprep.subr.bf16.mxu0 0
  %692 = vmatpush2.bf16.msra.mxu0 %v514
  %693 = vmatprep.subr.bf16.mxu0 0
  %694 = vmatpush2.bf16.msra.mxu0 %v513
  %695 = vmatprep.subr.bf16.mxu0 0
  %696 = vmatpush2.bf16.msra.mxu0 %v512
  %697 = vmatprep.subr.bf16.mxu0 0
  %698 = vmatpush2.bf16.msra.mxu0 %v511
  %699 = vmatprep.subr.bf16.mxu0 0
  %700 = vmatpush2.bf16.msra.mxu0 %v510
  %701 = vmatprep.subr.bf16.mxu0 0
  %702 = vmatpush2.bf16.msra.mxu0 %v509
  %703 = vmatprep.subr.bf16.mxu0 0
  %704 = vmatpush2.bf16.msra.mxu0 %v508
  %705 = vmatprep.subr.bf16.mxu0 0
  %706 = vmatpush2.bf16.msra.mxu0 %v507
  %707 = vmatprep.mubr.bf16.mxu0 %v80
  %708 = vmatmul.mubr.bf16.gmra.mxu0 %v79
  %v709 = vpop.f32.mrf.mxu0
  %v710 = vadd.f32 %v670, %v709
  %v711 = vpop.f32.mrf.mxu0
  %v712 = vpop.f32.mrf.mxu0
  %v713 = vpop.f32.mrf.mxu0
  %714 = vdwg.mxu0
  %715 = vmatprep.subr.bf16.mxu0 0
  %716 = vmatpush1.bf16.msra.mxu0 %v522
  %717 = vmatprep.subr.bf16.mxu0 0
  %718 = vmatpush1.bf16.msra.mxu0 %v521
  %719 = vmatprep.subr.bf16.mxu0 0
  %720 = vmatpush1.bf16.msra.mxu0 %v520
  %721 = vmatprep.subr.bf16.mxu0 0
  %722 = vmatpush1.bf16.msra.mxu0 %v519
  %723 = vmatprep.subr.bf16.mxu0 0
  %724 = vmatpush1.bf16.msra.mxu0 %v518
  %725 = vmatprep.subr.bf16.mxu0 0
  %726 = vmatpush1.bf16.msra.mxu0 %v517
  %727 = vmatprep.subr.bf16.mxu0 0
  %728 = vmatpush1.bf16.msra.mxu0 %v516
  %729 = vmatprep.subr.bf16.mxu0 0
  %730 = vmatpush1.bf16.msra.mxu0 %v515
  %731 = vmatprep.subr.bf16.mxu0 0
  %732 = vmatpush2.bf16.msra.mxu0 %v530
  %733 = vmatprep.subr.bf16.mxu0 0
  %734 = vmatpush2.bf16.msra.mxu0 %v529
  %735 = vmatprep.subr.bf16.mxu0 0
  %736 = vmatpush2.bf16.msra.mxu0 %v528
  %737 = vmatprep.subr.bf16.mxu0 0
  %738 = vmatpush2.bf16.msra.mxu0 %v527
  %739 = vmatprep.subr.bf16.mxu0 0
  %740 = vmatpush2.bf16.msra.mxu0 %v526
  %741 = vmatprep.subr.bf16.mxu0 0
  %742 = vmatpush2.bf16.msra.mxu0 %v525
  %743 = vmatprep.subr.bf16.mxu0 0
  %744 = vmatpush2.bf16.msra.mxu0 %v524
  %745 = vmatprep.subr.bf16.mxu0 0
  %746 = vmatpush2.bf16.msra.mxu0 %v523
  %747 = vmatprep.mubr.bf16.mxu0 %v82
  %748 = vmatmul.mubr.bf16.gmra.mxu0 %v81
  %v749 = vpop.f32.mrf.mxu0
  %v750 = vadd.f32 %v710, %v749
  %v751 = vpop.f32.mrf.mxu0
  %v752 = vpop.f32.mrf.mxu0
  %v753 = vpop.f32.mrf.mxu0
  %754 = vdwg.mxu0
  %v755 = vpack.c.bf16 %v750, %v750
  %vm756 = vcmask 261120
  %v758 = vsel %vm756, %v755, 0
  %v761 = vsel %vm756, %v36, 0
  %763 = vmatprep.subr.bf16.mxu0 0
  %764 = vmatpush1.bf16.xpose.msra.mxu0 0
  %765 = vmatprep.subr.bf16.mxu0 0
  %766 = vmatpush1.bf16.xpose.msra.mxu0 0
  %767 = vmatprep.subr.bf16.mxu0 0
  %768 = vmatpush1.bf16.xpose.msra.mxu0 0
  %769 = vmatprep.subr.bf16.mxu0 0
  %770 = vmatpush1.bf16.xpose.msra.mxu0 0
  %771 = vmatprep.subr.bf16.mxu0 0
  %772 = vmatpush1.bf16.xpose.msra.mxu0 0
  %773 = vmatprep.subr.bf16.mxu0 0
  %774 = vmatpush1.bf16.xpose.msra.mxu0 0
  %775 = vmatprep.subr.bf16.mxu0 0
  %776 = vmatpush1.bf16.xpose.msra.mxu0 0
  %777 = vmatprep.subr.bf16.mxu0 0
  %778 = vmatpush1.bf16.xpose.msra.mxu0 %v761
  %779 = vmatprep.subr.bf16.mxu0 0
  %780 = vmatpush2.bf16.xpose.msra.mxu0 0
  %781 = vmatprep.subr.bf16.mxu0 0
  %782 = vmatpush2.bf16.xpose.msra.mxu0 0
  %783 = vmatprep.subr.bf16.mxu0 0
  %784 = vmatpush2.bf16.xpose.msra.mxu0 0
  %785 = vmatprep.subr.bf16.mxu0 0
  %786 = vmatpush2.bf16.xpose.msra.mxu0 0
  %787 = vmatprep.subr.bf16.mxu0 0
  %788 = vmatpush2.bf16.xpose.msra.mxu0 0
  %789 = vmatprep.subr.bf16.mxu0 0
  %790 = vmatpush2.bf16.xpose.msra.mxu0 0
  %791 = vmatprep.subr.bf16.mxu0 0
  %792 = vmatpush2.bf16.xpose.msra.mxu0 0
  %793 = vmatprep.subr.bf16.mxu0 0
  %794 = vmatpush2.bf16.xpose.msra.mxu0 0
  %795 = vmatprep.mubr.bf16.mxu0 0
  %796 = vmatmul.mubr.bf16.gmra.mxu0 %v758
  %v797 = vpop.f32.mrf.mxu0
  %v798 = vadd.f32 0.0, %v797
  %v799 = vpop.f32.mrf.mxu0
  %v800 = vpop.f32.mrf.mxu0
  %v801 = vpop.f32.mrf.mxu0
  %802 = vdwg.mxu0
  %v803 = vld [vmem:[%s2] sm:$0x3]
  %v804 = vpack.c.bf16 %v803, %v803
  %v809 = vunpack.c.l.b16 %v38
  %v810 = vunpack.c.l.b16 %v39
  %v811 = vunpack.c.l.b16 %v40
  %v812 = vunpack.c.l.b16 %v41
  %v813 = vpack.c.b16 %v810, %v809
  %v814 = vpack.c.b16 %v812, %v811
  %v818 = vsel %vm756, %v804, 0
  %820 = vmatprep.subr.bf16.mxu0 0
  %821 = vmatpush1.bf16.msra.mxu0 0
  %822 = vmatprep.subr.bf16.mxu0 0
  %823 = vmatpush1.bf16.msra.mxu0 0
  %824 = vmatprep.subr.bf16.mxu0 0
  %825 = vmatpush1.bf16.msra.mxu0 0
  %826 = vmatprep.subr.bf16.mxu0 0
  %827 = vmatpush1.bf16.msra.mxu0 0
  %828 = vmatprep.subr.bf16.mxu0 0
  %829 = vmatpush1.bf16.msra.mxu0 0
  %830 = vmatprep.subr.bf16.mxu0 0
  %831 = vmatpush1.bf16.msra.mxu0 0
  %832 = vmatprep.subr.bf16.mxu0 0
  %833 = vmatpush1.bf16.msra.mxu0 %v814
  %834 = vmatprep.subr.bf16.mxu0 0
  %835 = vmatpush1.bf16.msra.mxu0 %v813
  %836 = vmatprep.subr.bf16.mxu0 0
  %837 = vmatpush2.bf16.msra.mxu0 0
  %838 = vmatprep.subr.bf16.mxu0 0
  %839 = vmatpush2.bf16.msra.mxu0 0
  %840 = vmatprep.subr.bf16.mxu0 0
  %841 = vmatpush2.bf16.msra.mxu0 0
  %842 = vmatprep.subr.bf16.mxu0 0
  %843 = vmatpush2.bf16.msra.mxu0 0
  %844 = vmatprep.subr.bf16.mxu0 0
  %845 = vmatpush2.bf16.msra.mxu0 0
  %846 = vmatprep.subr.bf16.mxu0 0
  %847 = vmatpush2.bf16.msra.mxu0 0
  %848 = vmatprep.subr.bf16.mxu0 0
  %849 = vmatpush2.bf16.msra.mxu0 0
  %850 = vmatprep.subr.bf16.mxu0 0
  %851 = vmatpush2.bf16.msra.mxu0 0
  %852 = vmatprep.mubr.bf16.mxu0 0
  %853 = vmatmul.mubr.bf16.gmra.mxu0 %v818
  %v854 = vpop.f32.mrf.mxu0
  %v855 = vadd.f32 0.0, %v854
  %v856 = vpop.f32.mrf.mxu0
  %v857 = vpop.f32.mrf.mxu0
  %v858 = vpop.f32.mrf.mxu0
  %859 = vdwg.mxu0
  %v860 = vpack.c.bf16 %v798, %v798
  %861 = vxpose.xlu0.c.b16.start [1/8] %v860, 128
  %862 = vxpose.xlu0.c.b16.cont [2/8] 0, 128
  %863 = vxpose.xlu0.c.b16.cont [3/8] 0, 128
  %864 = vxpose.xlu0.c.b16.cont [4/8] 0, 128
  %865 = vxpose.xlu0.c.b16.cont [5/8] 0, 128
  %866 = vxpose.xlu0.c.b16.cont [6/8] 0, 128
  %867 = vxpose.xlu0.c.b16.cont [7/8] 0, 128
  %868 = vxpose.xlu0.c.b16.end [8/8] 0, 128
  %v869 = vpop.trf.xlu0
  %v870 = vpop.trf.xlu0
  %v871 = vpop.trf.xlu0
  %v872 = vpop.trf.xlu0
  %v873 = vpop.trf.xlu0
  %v874 = vpop.trf.xlu0
  %v875 = vpop.trf.xlu0
  %v876 = vpop.trf.xlu0
  %v878 = vunpack.c.l.b16 %v37
  %v879 = vunpack.c.h.b16 %v37
  %v880 = vpack.c.b16 %v878, %v878
  %v881 = vpack.c.b16 %v879, %v879
  %vm882 = vcmask 23552
  %v884 = vsel %vm882, %v869, 0
  %vm886 = vcmask 1040384
  %vm887 = vcmask 1041408
  %v888 = vsel %vm886, 4294967295, 65535
  %v889 = vsel %vm887, %v888, 0
  %v891 = vand.u32 %v880, %v889
  %v894 = vand.u32 %v881, %v889
  %896 = vmatprep.subr.bf16.mxu0 0
  %897 = vmatpush1.bf16.msra.mxu0 0
  %898 = vmatprep.subr.bf16.mxu0 0
  %899 = vmatpush1.bf16.msra.mxu0 0
  %900 = vmatprep.subr.bf16.mxu0 0
  %901 = vmatpush1.bf16.msra.mxu0 0
  %902 = vmatprep.subr.bf16.mxu0 0
  %903 = vmatpush1.bf16.msra.mxu0 0
  %904 = vmatprep.subr.bf16.mxu0 0
  %905 = vmatpush1.bf16.msra.mxu0 0
  %906 = vmatprep.subr.bf16.mxu0 0
  %907 = vmatpush1.bf16.msra.mxu0 0
  %908 = vmatprep.subr.bf16.mxu0 0
  %909 = vmatpush1.bf16.msra.mxu0 0
  %910 = vmatprep.subr.bf16.mxu0 %v894
  %911 = vmatpush1.bf16.msra.mxu0 %v891
  %912 = vmatprep.subr.bf16.mxu0 0
  %913 = vmatpush2.bf16.msra.mxu0 0
  %914 = vmatprep.subr.bf16.mxu0 0
  %915 = vmatpush2.bf16.msra.mxu0 0
  %916 = vmatprep.subr.bf16.mxu0 0
  %917 = vmatpush2.bf16.msra.mxu0 0
  %918 = vmatprep.subr.bf16.mxu0 0
  %919 = vmatpush2.bf16.msra.mxu0 0
  %920 = vmatprep.subr.bf16.mxu0 0
  %921 = vmatpush2.bf16.msra.mxu0 0
  %922 = vmatprep.subr.bf16.mxu0 0
  %923 = vmatpush2.bf16.msra.mxu0 0
  %924 = vmatprep.subr.bf16.mxu0 0
  %925 = vmatpush2.bf16.msra.mxu0 0
  %926 = vmatprep.subr.bf16.mxu0 0
  %927 = vmatpush2.bf16.msra.mxu0 0
  %928 = vmatprep.mubr.bf16.mxu0 0
  %929 = vmatmul.mubr.bf16.gmra.mxu0 %v884
  %v930 = vpop.f32.mrf.mxu0
  %v931 = vadd.f32 0.0, %v930
  %v932 = vpop.f32.mrf.mxu0
  %v933 = vadd.f32 0.0, %v932
  %v934 = vpop.f32.mrf.mxu0
  %v935 = vpop.f32.mrf.mxu0
  %936 = vdwg.mxu0
  %v937 = vlaneseq
  %v938 = vshrl.u32 %v937, 7
  %v939 = vsub.s32 0, %v938
  %v940 = vrot.slane %v855, %v939
  %v941 = vadd.f32 %v933, %v940
  %v943 = vshrl.u32 %v860, 16
  %v945 = vrot.slane %v943, 1
  %v946 = vshll.u32 %v860, 16
  %v948 = vrot.slane %v946, 2
  %v949 = vor.u32 %v945, %v948
  %951 = vxpose.xlu0.c.b16.start [1/8] %v949, 128
  %952 = vxpose.xlu0.c.b16.cont [2/8] 0, 128
  %953 = vxpose.xlu0.c.b16.cont [3/8] 0, 128
  %954 = vxpose.xlu0.c.b16.cont [4/8] 0, 128
  %955 = vxpose.xlu0.c.b16.cont [5/8] 0, 128
  %956 = vxpose.xlu0.c.b16.cont [6/8] 0, 128
  %957 = vxpose.xlu0.c.b16.cont [7/8] 0, 128
  %958 = vxpose.xlu0.c.b16.end [8/8] 0, 128
  %v959 = vpop.trf.xlu0
  %v960 = vpop.trf.xlu0
  %v961 = vpop.trf.xlu0
  %v962 = vpop.trf.xlu0
  %v963 = vpop.trf.xlu0
  %v964 = vpop.trf.xlu0
  %v965 = vpop.trf.xlu0
  %v966 = vpop.trf.xlu0
  %v968 = vsel %vm882, %v959, 0
  %970 = vmatprep.subr.bf16.mxu0 0
  %971 = vmatpush1.bf16.msra.mxu0 0
  %972 = vmatprep.subr.bf16.mxu0 0
  %973 = vmatpush1.bf16.msra.mxu0 0
  %974 = vmatprep.subr.bf16.mxu0 0
  %975 = vmatpush1.bf16.msra.mxu0 0
  %976 = vmatprep.subr.bf16.mxu0 0
  %977 = vmatpush1.bf16.msra.mxu0 0
  %978 = vmatprep.subr.bf16.mxu0 0
  %979 = vmatpush1.bf16.msra.mxu0 0
  %980 = vmatprep.subr.bf16.mxu0 0
  %981 = vmatpush1.bf16.msra.mxu0 0
  %982 = vmatprep.subr.bf16.mxu0 0
  %983 = vmatpush1.bf16.msra.mxu0 0
  %984 = vmatprep.subr.bf16.mxu0 %v894
  %985 = vmatpush1.bf16.msra.mxu0 %v891
  %986 = vmatprep.subr.bf16.mxu0 0
  %987 = vmatpush2.bf16.msra.mxu0 0
  %988 = vmatprep.subr.bf16.mxu0 0
  %989 = vmatpush2.bf16.msra.mxu0 0
  %990 = vmatprep.subr.bf16.mxu0 0
  %991 = vmatpush2.bf16.msra.mxu0 0
  %992 = vmatprep.subr.bf16.mxu0 0
  %993 = vmatpush2.bf16.msra.mxu0 0
  %994 = vmatprep.subr.bf16.mxu0 0
  %995 = vmatpush2.bf16.msra.mxu0 0
  %996 = vmatprep.subr.bf16.mxu0 0
  %997 = vmatpush2.bf16.msra.mxu0 0
  %998 = vmatprep.subr.bf16.mxu0 0
  %999 = vmatpush2.bf16.msra.mxu0 0
  %1000 = vmatprep.subr.bf16.mxu0 0
  %1001 = vmatpush2.bf16.msra.mxu0 0
  %1002 = vmatprep.mubr.bf16.mxu0 0
  %1003 = vmatmul.mubr.bf16.gmra.mxu0 %v968
  %v1004 = vpop.f32.mrf.mxu0
  %v1005 = vadd.f32 0.0, %v1004
  %v1006 = vpop.f32.mrf.mxu0
  %v1007 = vadd.f32 0.0, %v1006
  %v1008 = vpop.f32.mrf.mxu0
  %v1009 = vpop.f32.mrf.mxu0
  %1010 = vdwg.mxu0
  %v1011 = vlaneseq
  %v1012 = vshrl.u32 %v1011, 7
  %v1013 = vsub.s32 1, %v1012
  %v1014 = vrot.slane %v855, %v1013
  %v1015 = vadd.f32 %v1007, %v1014
  %v1016 = vmul.f32 %v941, %v941
  %v1017 = vmul.f32 %v1015, %v1015
  %v1018 = vsel %vm756, %v1016, 0.0
  %1019 = vadd.xlane.f32.xlu0 %v1018
  %v1020 = vpop.xlane.xlu0 %1019
  %v1021 = vsel %vm756, %v1017, 0.0
  %1022 = vadd.xlane.f32.xlu0 %v1021
  %v1023 = vpop.xlane.xlu0 %1022
  %v1024 = vadd.f32 %v1020, 1e-12
  %v1025 = vadd.f32 %v1023, 1e-12
  %v1026 = vrsqrt.pop %v1024
  %v1027 = vrsqrt.pop %v1025
  %v1028 = vmul.f32 %v941, %v1026
  %v1029 = vmul.f32 %v1015, %v1027
  %v1030 = vpack.c.bf16 %v1029, %v1028
  %1031 = vrot.lane.b32.xlu0 %v813, 96
  %v1032 = vpop.permute.xlu0 %1031
  %1033 = vrot.lane.b32.xlu0 %v814, 96
  %v1034 = vpop.permute.xlu0 %1033
  %v1038 = vsel %vm756, %v1030, 0
  %1040 = vmatprep.subr.bf16.mxu0 0
  %1041 = vmatpush1.bf16.msra.mxu0 0
  %1042 = vmatprep.subr.bf16.mxu0 0
  %1043 = vmatpush1.bf16.msra.mxu0 0
  %1044 = vmatprep.subr.bf16.mxu0 0
  %1045 = vmatpush1.bf16.msra.mxu0 0
  %1046 = vmatprep.subr.bf16.mxu0 0
  %1047 = vmatpush1.bf16.msra.mxu0 0
  %1048 = vmatprep.subr.bf16.mxu0 0
  %1049 = vmatpush1.bf16.msra.mxu0 0
  %1050 = vmatprep.subr.bf16.mxu0 0
  %1051 = vmatpush1.bf16.msra.mxu0 0
  %1052 = vmatprep.subr.bf16.mxu0 0
  %1053 = vmatpush1.bf16.msra.mxu0 %v1034
  %1054 = vmatprep.subr.bf16.mxu0 0
  %1055 = vmatpush1.bf16.msra.mxu0 %v1032
  %1056 = vmatprep.subr.bf16.mxu0 0
  %1057 = vmatpush2.bf16.msra.mxu0 0
  %1058 = vmatprep.subr.bf16.mxu0 0
  %1059 = vmatpush2.bf16.msra.mxu0 0
  %1060 = vmatprep.subr.bf16.mxu0 0
  %1061 = vmatpush2.bf16.msra.mxu0 0
  %1062 = vmatprep.subr.bf16.mxu0 0
  %1063 = vmatpush2.bf16.msra.mxu0 0
  %1064 = vmatprep.subr.bf16.mxu0 0
  %1065 = vmatpush2.bf16.msra.mxu0 0
  %1066 = vmatprep.subr.bf16.mxu0 0
  %1067 = vmatpush2.bf16.msra.mxu0 0
  %1068 = vmatprep.subr.bf16.mxu0 0
  %1069 = vmatpush2.bf16.msra.mxu0 0
  %1070 = vmatprep.subr.bf16.mxu0 0
  %1071 = vmatpush2.bf16.msra.mxu0 0
  %1072 = vmatprep.mubr.bf16.mxu0 0
  %1073 = vmatmul.mubr.bf16.gmra.mxu0 %v1038
  %v1074 = vpop.f32.mrf.mxu0
  %v1075 = vadd.f32 0.0, %v1074
  %v1076 = vpop.f32.mrf.mxu0
  %v1077 = vpop.f32.mrf.mxu0
  %v1078 = vadd.f32 0.0, %v1077
  %v1079 = vpop.f32.mrf.mxu0
  %1080 = vdwg.mxu0
  %vm1081 = vcmask 48128
  %v1082 = vsel %vm1081, %v1075, -inf
  %1083 = vmax.xlane.f32.xlu0 %v1082
  %v1084 = vpop.xlane.xlu0 %1083
  %v1085 = vsel %vm1081, %v1078, -inf
  %1086 = vmax.xlane.f32.xlu0 %v1085
  %v1087 = vpop.xlane.xlu0 %1086
  %v1088 = vsub.f32 %v1075, %v1084
  %v1089 = vsub.f32 %v1078, %v1087
  %v1090 = vmul.f32 %v1088, 1.442695
  %v1091 = vpow.pop %v1090
  %v1092 = vmul.f32 %v1089, 1.442695
  %v1093 = vpow.pop %v1092
  %v1094 = vsel %vm1081, %v1091, 0.0
  %1095 = vadd.xlane.f32.xlu0 %v1094
  %v1096 = vpop.xlane.xlu0 %1095
  %v1097 = vsel %vm1081, %v1093, 0.0
  %1098 = vadd.xlane.f32.xlu0 %v1097
  %v1099 = vpop.xlane.xlu0 %1098
  %v1100 = vrcp.pop %v1096
  %v1101 = vrcp.pop %v1099
  %v1102 = vmul.f32 %v1091, %v1100
  %v1103 = vmul.f32 %v1093, %v1101
  %v1104 = vxor.u32 %v931, 2147483648
  %v1105 = vxor.u32 %v1005, 2147483648
  %v1106 = vmul.f32 %v1104, 1.442695
  %v1107 = vpow.pop %v1106
  %v1108 = vmul.f32 %v1105, 1.442695
  %v1109 = vpow.pop %v1108
  %v1110 = vadd.f32 %v1107, 1.0
  %v1111 = vadd.f32 %v1109, 1.0
  %v1112 = vrcp.pop %v1110
  %v1113 = vmul.f32 1.0, %v1112
  %v1114 = vrcp.pop %v1111
  %v1115 = vmul.f32 1.0, %v1114
  %1117 = vset.pattern.permute.xlu0 4
  %1118 = vperm.xlu0 %1117, %v1102
  %v1119 = vpop.permute.xlu0 %1118
  %1122 = vset.pattern.permute.xlu0 4
  %1123 = vperm.xlu0 %1122, %v1103
  %v1124 = vpop.permute.xlu0 %1123
  %v1126 = vmul.f32 %v1119, %v1113
  %v1127 = vmul.f32 %v1124, %v1115
  %v1128 = vrot.slane %v1126, 4
  %v1129 = vadd.f32 %v1126, %v1128
  %v1130 = vrot.slane %v1129, 2
  %v1131 = vadd.f32 %v1129, %v1130
  %v1132 = vrot.slane %v1131, 1
  %v1133 = vadd.f32 %v1131, %v1132
  %v1134 = vrot.slane %v1127, 4
  %v1135 = vadd.f32 %v1127, %v1134
  %v1136 = vrot.slane %v1135, 2
  %v1137 = vadd.f32 %v1135, %v1136
  %v1138 = vrot.slane %v1137, 1
  %v1139 = vadd.f32 %v1137, %v1138
  %v1140 = vsel %vm886, %v1133, %v1139
  %v1142 = vrot.slane %v1140, 6
  %1143 = vrot.lane.b32.xlu0 %v1142, 64
  %v1144 = vpop.permute.xlu0 %1143
  %v1146 = vsel %vm887, %v1140, %v1144
  %v1147 = vpack.c.bf16 %v1146, %v1146
  %v1148 = vld [vmem:[%s6] sm:$0xff]
  %v1149 = vld [vmem:[%s6 + $0x8] sm:$0xff]
  %v1150 = vld [vmem:[%s6 + $0x10] sm:$0xff]
  %v1151 = vld [vmem:[%s6 + $0x18] sm:$0xff]
  %v1152 = vld [vmem:[%s6 + $0x20] sm:$0xff]
  %v1153 = vld [vmem:[%s6 + $0x28] sm:$0xff]
  %v1154 = vld [vmem:[%s6 + $0x30] sm:$0xff]
  %v1155 = vld [vmem:[%s6 + $0x38] sm:$0xff]
  %v1156 = vld [vmem:[%s6 + $0x40] sm:$0xff]
  %v1157 = vld [vmem:[%s6 + $0x48] sm:$0xff]
  %v1158 = vld [vmem:[%s6 + $0x50] sm:$0xff]
  %v1159 = vld [vmem:[%s6 + $0x58] sm:$0xff]
  %v1160 = vld [vmem:[%s6 + $0x60] sm:$0xff]
  %v1161 = vld [vmem:[%s6 + $0x68] sm:$0xff]
  %v1162 = vld [vmem:[%s6 + $0x70] sm:$0xff]
  %v1163 = vld [vmem:[%s6 + $0x78] sm:$0xff]
  %v1164 = vld [vmem:[%s6 + $0x80] sm:$0xff]
  %v1165 = vld [vmem:[%s6 + $0x88] sm:$0xff]
  %v1166 = vld [vmem:[%s6 + $0x90] sm:$0xff]
  %v1167 = vld [vmem:[%s6 + $0x98] sm:$0xff]
  %v1168 = vld [vmem:[%s6 + $0xa0] sm:$0xff]
  %v1169 = vld [vmem:[%s6 + $0xa8] sm:$0xff]
  %v1170 = vld [vmem:[%s6 + $0xb0] sm:$0xff]
  %v1171 = vld [vmem:[%s6 + $0xb8] sm:$0xff]
  %v1172 = vld [vmem:[%s6 + $0xc0] sm:$0xff]
  %v1173 = vld [vmem:[%s6 + $0xc8] sm:$0xff]
  %v1174 = vld [vmem:[%s6 + $0xd0] sm:$0xff]
  %v1175 = vld [vmem:[%s6 + $0xd8] sm:$0xff]
  %v1176 = vld [vmem:[%s6 + $0xe0] sm:$0xff]
  %v1177 = vld [vmem:[%s6 + $0xe8] sm:$0xff]
  %v1178 = vld [vmem:[%s6 + $0xf0] sm:$0xff]
  %v1179 = vld [vmem:[%s6 + $0xf8] sm:$0xff]
  %v1212 = vunpack.c.l.b16 %v1148
  %v1213 = vunpack.c.h.b16 %v1148
  %v1214 = vunpack.c.l.b16 %v1149
  %v1215 = vunpack.c.h.b16 %v1149
  %v1216 = vunpack.c.l.b16 %v1150
  %v1217 = vunpack.c.h.b16 %v1150
  %v1218 = vunpack.c.l.b16 %v1151
  %v1219 = vunpack.c.h.b16 %v1151
  %v1220 = vunpack.c.l.b16 %v1152
  %v1221 = vunpack.c.h.b16 %v1152
  %v1222 = vunpack.c.l.b16 %v1153
  %v1223 = vunpack.c.h.b16 %v1153
  %v1224 = vunpack.c.l.b16 %v1154
  %v1225 = vunpack.c.h.b16 %v1154
  %v1226 = vunpack.c.l.b16 %v1155
  %v1227 = vunpack.c.h.b16 %v1155
  %v1228 = vunpack.c.l.b16 %v1156
  %v1229 = vunpack.c.h.b16 %v1156
  %v1230 = vunpack.c.l.b16 %v1157
  %v1231 = vunpack.c.h.b16 %v1157
  %v1232 = vunpack.c.l.b16 %v1158
  %v1233 = vunpack.c.h.b16 %v1158
  %v1234 = vunpack.c.l.b16 %v1159
  %v1235 = vunpack.c.h.b16 %v1159
  %v1236 = vunpack.c.l.b16 %v1160
  %v1237 = vunpack.c.h.b16 %v1160
  %v1238 = vunpack.c.l.b16 %v1161
  %v1239 = vunpack.c.h.b16 %v1161
  %v1240 = vunpack.c.l.b16 %v1162
  %v1241 = vunpack.c.h.b16 %v1162
  %v1242 = vunpack.c.l.b16 %v1163
  %v1243 = vunpack.c.h.b16 %v1163
  %v1244 = vunpack.c.l.b16 %v1164
  %v1245 = vunpack.c.h.b16 %v1164
  %v1246 = vunpack.c.l.b16 %v1165
  %v1247 = vunpack.c.h.b16 %v1165
  %v1248 = vunpack.c.l.b16 %v1166
  %v1249 = vunpack.c.h.b16 %v1166
  %v1250 = vunpack.c.l.b16 %v1167
  %v1251 = vunpack.c.h.b16 %v1167
  %v1252 = vunpack.c.l.b16 %v1168
  %v1253 = vunpack.c.h.b16 %v1168
  %v1254 = vunpack.c.l.b16 %v1169
  %v1255 = vunpack.c.h.b16 %v1169
  %v1256 = vunpack.c.l.b16 %v1170
  %v1257 = vunpack.c.h.b16 %v1170
  %v1258 = vunpack.c.l.b16 %v1171
  %v1259 = vunpack.c.h.b16 %v1171
  %v1260 = vunpack.c.l.b16 %v1172
  %v1261 = vunpack.c.h.b16 %v1172
  %v1262 = vunpack.c.l.b16 %v1173
  %v1263 = vunpack.c.h.b16 %v1173
  %v1264 = vunpack.c.l.b16 %v1174
  %v1265 = vunpack.c.h.b16 %v1174
  %v1266 = vunpack.c.l.b16 %v1175
  %v1267 = vunpack.c.h.b16 %v1175
  %v1268 = vunpack.c.l.b16 %v1176
  %v1269 = vunpack.c.h.b16 %v1176
  %v1270 = vunpack.c.l.b16 %v1177
  %v1271 = vunpack.c.h.b16 %v1177
  %v1272 = vunpack.c.l.b16 %v1178
  %v1273 = vunpack.c.h.b16 %v1178
  %v1274 = vunpack.c.l.b16 %v1179
  %v1275 = vunpack.c.h.b16 %v1179
  %v1276 = vpack.c.b16 %v1220, %v1212
  %v1277 = vpack.c.b16 %v1221, %v1213
  %v1278 = vpack.c.b16 %v1222, %v1214
  %v1279 = vpack.c.b16 %v1223, %v1215
  %v1280 = vpack.c.b16 %v1224, %v1216
  %v1281 = vpack.c.b16 %v1225, %v1217
  %v1282 = vpack.c.b16 %v1226, %v1218
  %v1283 = vpack.c.b16 %v1227, %v1219
  %v1284 = vpack.c.b16 %v1236, %v1228
  %v1285 = vpack.c.b16 %v1237, %v1229
  %v1286 = vpack.c.b16 %v1238, %v1230
  %v1287 = vpack.c.b16 %v1239, %v1231
  %v1288 = vpack.c.b16 %v1240, %v1232
  %v1289 = vpack.c.b16 %v1241, %v1233
  %v1290 = vpack.c.b16 %v1242, %v1234
  %v1291 = vpack.c.b16 %v1243, %v1235
  %v1292 = vpack.c.b16 %v1252, %v1244
  %v1293 = vpack.c.b16 %v1253, %v1245
  %v1294 = vpack.c.b16 %v1254, %v1246
  %v1295 = vpack.c.b16 %v1255, %v1247
  %v1296 = vpack.c.b16 %v1256, %v1248
  %v1297 = vpack.c.b16 %v1257, %v1249
  %v1298 = vpack.c.b16 %v1258, %v1250
  %v1299 = vpack.c.b16 %v1259, %v1251
  %v1300 = vpack.c.b16 %v1268, %v1260
  %v1301 = vpack.c.b16 %v1269, %v1261
  %v1302 = vpack.c.b16 %v1270, %v1262
  %v1303 = vpack.c.b16 %v1271, %v1263
  %v1304 = vpack.c.b16 %v1272, %v1264
  %v1305 = vpack.c.b16 %v1273, %v1265
  %v1306 = vpack.c.b16 %v1274, %v1266
  %v1307 = vpack.c.b16 %v1275, %v1267
  %vm1340 = vcmask 523264
  %v1342 = vsel %vm1340, %v1147, 0
  %1344 = vmatprep.subr.bf16.mxu0 0
  %1345 = vmatpush1.bf16.msra.mxu0 0
  %1346 = vmatprep.subr.bf16.mxu0 0
  %1347 = vmatpush1.bf16.msra.mxu0 0
  %1348 = vmatprep.subr.bf16.mxu0 0
  %1349 = vmatpush1.bf16.msra.mxu0 0
  %1350 = vmatprep.subr.bf16.mxu0 0
  %1351 = vmatpush1.bf16.msra.mxu0 0
  %1352 = vmatprep.subr.bf16.mxu0 %v1301
  %1353 = vmatpush1.bf16.msra.mxu0 %v1300
  %1354 = vmatprep.subr.bf16.mxu0 %v1293
  %1355 = vmatpush1.bf16.msra.mxu0 %v1292
  %1356 = vmatprep.subr.bf16.mxu0 %v1285
  %1357 = vmatpush1.bf16.msra.mxu0 %v1284
  %1358 = vmatprep.subr.bf16.mxu0 %v1277
  %1359 = vmatpush1.bf16.msra.mxu0 %v1276
  %1360 = vmatprep.subr.bf16.mxu0 0
  %1361 = vmatpush2.bf16.msra.mxu0 0
  %1362 = vmatprep.subr.bf16.mxu0 0
  %1363 = vmatpush2.bf16.msra.mxu0 0
  %1364 = vmatprep.subr.bf16.mxu0 0
  %1365 = vmatpush2.bf16.msra.mxu0 0
  %1366 = vmatprep.subr.bf16.mxu0 0
  %1367 = vmatpush2.bf16.msra.mxu0 0
  %1368 = vmatprep.subr.bf16.mxu0 0
  %1369 = vmatpush2.bf16.msra.mxu0 0
  %1370 = vmatprep.subr.bf16.mxu0 0
  %1371 = vmatpush2.bf16.msra.mxu0 0
  %1372 = vmatprep.subr.bf16.mxu0 0
  %1373 = vmatpush2.bf16.msra.mxu0 0
  %1374 = vmatprep.subr.bf16.mxu0 0
  %1375 = vmatpush2.bf16.msra.mxu0 0
  %1376 = vmatprep.mubr.bf16.mxu0 0
  %1377 = vmatmul.mubr.bf16.gmra.mxu0 %v1342
  %v1378 = vpop.f32.mrf.mxu0
  %v1379 = vadd.f32 0.0, %v1378
  %v1380 = vpop.f32.mrf.mxu0
  %v1381 = vadd.f32 0.0, %v1380
  %v1382 = vpop.f32.mrf.mxu0
  %v1383 = vpop.f32.mrf.mxu0
  %1384 = vdwg.mxu0
  %1385 = vmatprep.subr.bf16.mxu0 0
  %1386 = vmatpush1.bf16.msra.mxu0 0
  %1387 = vmatprep.subr.bf16.mxu0 0
  %1388 = vmatpush1.bf16.msra.mxu0 0
  %1389 = vmatprep.subr.bf16.mxu0 0
  %1390 = vmatpush1.bf16.msra.mxu0 0
  %1391 = vmatprep.subr.bf16.mxu0 0
  %1392 = vmatpush1.bf16.msra.mxu0 0
  %1393 = vmatprep.subr.bf16.mxu0 %v1303
  %1394 = vmatpush1.bf16.msra.mxu0 %v1302
  %1395 = vmatprep.subr.bf16.mxu0 %v1295
  %1396 = vmatpush1.bf16.msra.mxu0 %v1294
  %1397 = vmatprep.subr.bf16.mxu0 %v1287
  %1398 = vmatpush1.bf16.msra.mxu0 %v1286
  %1399 = vmatprep.subr.bf16.mxu0 %v1279
  %1400 = vmatpush1.bf16.msra.mxu0 %v1278
  %1401 = vmatprep.subr.bf16.mxu0 0
  %1402 = vmatpush2.bf16.msra.mxu0 0
  %1403 = vmatprep.subr.bf16.mxu0 0
  %1404 = vmatpush2.bf16.msra.mxu0 0
  %1405 = vmatprep.subr.bf16.mxu0 0
  %1406 = vmatpush2.bf16.msra.mxu0 0
  %1407 = vmatprep.subr.bf16.mxu0 0
  %1408 = vmatpush2.bf16.msra.mxu0 0
  %1409 = vmatprep.subr.bf16.mxu0 0
  %1410 = vmatpush2.bf16.msra.mxu0 0
  %1411 = vmatprep.subr.bf16.mxu0 0
  %1412 = vmatpush2.bf16.msra.mxu0 0
  %1413 = vmatprep.subr.bf16.mxu0 0
  %1414 = vmatpush2.bf16.msra.mxu0 0
  %1415 = vmatprep.subr.bf16.mxu0 0
  %1416 = vmatpush2.bf16.msra.mxu0 0
  %1417 = vmatprep.mubr.bf16.mxu0 0
  %1418 = vmatmul.mubr.bf16.gmra.mxu0 %v1342
  %v1419 = vpop.f32.mrf.mxu0
  %v1420 = vadd.f32 0.0, %v1419
  %v1421 = vpop.f32.mrf.mxu0
  %v1422 = vadd.f32 0.0, %v1421
  %v1423 = vpop.f32.mrf.mxu0
  %v1424 = vpop.f32.mrf.mxu0
  %1425 = vdwg.mxu0
  %1426 = vmatprep.subr.bf16.mxu0 0
  %1427 = vmatpush1.bf16.msra.mxu0 0
  %1428 = vmatprep.subr.bf16.mxu0 0
  %1429 = vmatpush1.bf16.msra.mxu0 0
  %1430 = vmatprep.subr.bf16.mxu0 0
  %1431 = vmatpush1.bf16.msra.mxu0 0
  %1432 = vmatprep.subr.bf16.mxu0 0
  %1433 = vmatpush1.bf16.msra.mxu0 0
  %1434 = vmatprep.subr.bf16.mxu0 %v1305
  %1435 = vmatpush1.bf16.msra.mxu0 %v1304
  %1436 = vmatprep.subr.bf16.mxu0 %v1297
  %1437 = vmatpush1.bf16.msra.mxu0 %v1296
  %1438 = vmatprep.subr.bf16.mxu0 %v1289
  %1439 = vmatpush1.bf16.msra.mxu0 %v1288
  %1440 = vmatprep.subr.bf16.mxu0 %v1281
  %1441 = vmatpush1.bf16.msra.mxu0 %v1280
  %1442 = vmatprep.subr.bf16.mxu0 0
  %1443 = vmatpush2.bf16.msra.mxu0 0
  %1444 = vmatprep.subr.bf16.mxu0 0
  %1445 = vmatpush2.bf16.msra.mxu0 0
  %1446 = vmatprep.subr.bf16.mxu0 0
  %1447 = vmatpush2.bf16.msra.mxu0 0
  %1448 = vmatprep.subr.bf16.mxu0 0
  %1449 = vmatpush2.bf16.msra.mxu0 0
  %1450 = vmatprep.subr.bf16.mxu0 0
  %1451 = vmatpush2.bf16.msra.mxu0 0
  %1452 = vmatprep.subr.bf16.mxu0 0
  %1453 = vmatpush2.bf16.msra.mxu0 0
  %1454 = vmatprep.subr.bf16.mxu0 0
  %1455 = vmatpush2.bf16.msra.mxu0 0
  %1456 = vmatprep.subr.bf16.mxu0 0
  %1457 = vmatpush2.bf16.msra.mxu0 0
  %1458 = vmatprep.mubr.bf16.mxu0 0
  %1459 = vmatmul.mubr.bf16.gmra.mxu0 %v1342
  %v1460 = vpop.f32.mrf.mxu0
  %v1461 = vadd.f32 0.0, %v1460
  %v1462 = vpop.f32.mrf.mxu0
  %v1463 = vadd.f32 0.0, %v1462
  %v1464 = vpop.f32.mrf.mxu0
  %v1465 = vpop.f32.mrf.mxu0
  %1466 = vdwg.mxu0
  %1467 = vmatprep.subr.bf16.mxu0 0
  %1468 = vmatpush1.bf16.msra.mxu0 0
  %1469 = vmatprep.subr.bf16.mxu0 0
  %1470 = vmatpush1.bf16.msra.mxu0 0
  %1471 = vmatprep.subr.bf16.mxu0 0
  %1472 = vmatpush1.bf16.msra.mxu0 0
  %1473 = vmatprep.subr.bf16.mxu0 0
  %1474 = vmatpush1.bf16.msra.mxu0 0
  %1475 = vmatprep.subr.bf16.mxu0 %v1307
  %1476 = vmatpush1.bf16.msra.mxu0 %v1306
  %1477 = vmatprep.subr.bf16.mxu0 %v1299
  %1478 = vmatpush1.bf16.msra.mxu0 %v1298
  %1479 = vmatprep.subr.bf16.mxu0 %v1291
  %1480 = vmatpush1.bf16.msra.mxu0 %v1290
  %1481 = vmatprep.subr.bf16.mxu0 %v1283
  %1482 = vmatpush1.bf16.msra.mxu0 %v1282
  %1483 = vmatprep.subr.bf16.mxu0 0
  %1484 = vmatpush2.bf16.msra.mxu0 0
  %1485 = vmatprep.subr.bf16.mxu0 0
  %1486 = vmatpush2.bf16.msra.mxu0 0
  %1487 = vmatprep.subr.bf16.mxu0 0
  %1488 = vmatpush2.bf16.msra.mxu0 0
  %1489 = vmatprep.subr.bf16.mxu0 0
  %1490 = vmatpush2.bf16.msra.mxu0 0
  %1491 = vmatprep.subr.bf16.mxu0 0
  %1492 = vmatpush2.bf16.msra.mxu0 0
  %1493 = vmatprep.subr.bf16.mxu0 0
  %1494 = vmatpush2.bf16.msra.mxu0 0
  %1495 = vmatprep.subr.bf16.mxu0 0
  %1496 = vmatpush2.bf16.msra.mxu0 0
  %1497 = vmatprep.subr.bf16.mxu0 0
  %1498 = vmatpush2.bf16.msra.mxu0 0
  %1499 = vmatprep.mubr.bf16.mxu0 0
  %1500 = vmatmul.mubr.bf16.gmra.mxu0 %v1342
  %v1501 = vpop.f32.mrf.mxu0
  %v1502 = vadd.f32 0.0, %v1501
  %v1503 = vpop.f32.mrf.mxu0
  %v1504 = vadd.f32 0.0, %v1503
  %v1505 = vpop.f32.mrf.mxu0
  %v1506 = vpop.f32.mrf.mxu0
  %1507 = vdwg.mxu0
  %v1508 = vmul.f32 %v1379, 0.003921569
  %v1509 = vmul.f32 %v1381, 0.003921569
  %v1510 = vmul.f32 %v1420, 0.003921569
  %v1511 = vmul.f32 %v1422, 0.003921569
  %v1512 = vmul.f32 %v1461, 0.003921569
  %v1513 = vmul.f32 %v1463, 0.003921569
  %v1514 = vmul.f32 %v1502, 0.003921569
  %v1515 = vmul.f32 %v1504, 0.003921569
  %vm1516 = vcmp.gt.f32.partialorder %v1379, 0.0
  %vm1517 = vcmp.gt.f32.partialorder %v1381, 0.0
  %vm1518 = vcmp.gt.f32.partialorder %v1420, 0.0
  %vm1519 = vcmp.gt.f32.partialorder %v1422, 0.0
  %vm1520 = vcmp.gt.f32.partialorder %v1461, 0.0
  %vm1521 = vcmp.gt.f32.partialorder %v1463, 0.0
  %vm1522 = vcmp.gt.f32.partialorder %v1502, 0.0
  %vm1523 = vcmp.gt.f32.partialorder %v1504, 0.0
  %v1524 = vsel %vm1516, 1, 0
  %v1525 = vsel %vm1517, 1, 0
  %v1526 = vsel %vm1518, 1, 0
  %v1527 = vsel %vm1519, 1, 0
  %v1528 = vsel %vm1520, 1, 0
  %v1529 = vsel %vm1521, 1, 0
  %v1530 = vsel %vm1522, 1, 0
  %v1531 = vsel %vm1523, 1, 0
  %v1532 = vcvt.s32.f32 %v1524
  %v1533 = vcvt.s32.f32 %v1525
  %v1534 = vcvt.s32.f32 %v1526
  %v1535 = vcvt.s32.f32 %v1527
  %v1536 = vcvt.s32.f32 %v1528
  %v1537 = vcvt.s32.f32 %v1529
  %v1538 = vcvt.s32.f32 %v1530
  %v1539 = vcvt.s32.f32 %v1531
  %v1548 = vrot.slane %v1532, 6
  %v1549 = vrot.slane %v1533, 6
  %v1550 = vrot.slane %v1534, 6
  %v1551 = vrot.slane %v1535, 6
  %v1552 = vrot.slane %v1536, 6
  %v1553 = vrot.slane %v1537, 6
  %v1554 = vrot.slane %v1538, 6
  %v1555 = vrot.slane %v1539, 6
  %v1564 = vmul.f32 %v1508, %v1548
  %v1565 = vmul.f32 %v1509, %v1549
  %v1566 = vmul.f32 %v1510, %v1550
  %v1567 = vmul.f32 %v1511, %v1551
  %v1568 = vmul.f32 %v1512, %v1552
  %v1569 = vmul.f32 %v1513, %v1553
  %v1570 = vmul.f32 %v1514, %v1554
  %v1571 = vmul.f32 %v1515, %v1555
  %v1572 = vlaneseq
  %v1573 = vshrl.u32 %v1572, 7
  %v1574 = vsub.s32 2, %v1573
  %v1575 = vrot.slane %v1564, %v1574
  %v1576 = vlaneseq
  %v1577 = vshrl.u32 %v1576, 7
  %v1578 = vsub.s32 2, %v1577
  %v1579 = vrot.slane %v1565, %v1578
  %v1580 = vlaneseq
  %v1581 = vshrl.u32 %v1580, 7
  %v1582 = vsub.s32 2, %v1581
  %v1583 = vrot.slane %v1566, %v1582
  %v1584 = vlaneseq
  %v1585 = vshrl.u32 %v1584, 7
  %v1586 = vsub.s32 2, %v1585
  %v1587 = vrot.slane %v1567, %v1586
  %v1588 = vlaneseq
  %v1589 = vshrl.u32 %v1588, 7
  %v1590 = vsub.s32 2, %v1589
  %v1591 = vrot.slane %v1568, %v1590
  %v1592 = vlaneseq
  %v1593 = vshrl.u32 %v1592, 7
  %v1594 = vsub.s32 2, %v1593
  %v1595 = vrot.slane %v1569, %v1594
  %v1596 = vlaneseq
  %v1597 = vshrl.u32 %v1596, 7
  %v1598 = vsub.s32 2, %v1597
  %v1599 = vrot.slane %v1570, %v1598
  %v1600 = vlaneseq
  %v1601 = vshrl.u32 %v1600, 7
  %v1602 = vsub.s32 2, %v1601
  %v1603 = vrot.slane %v1571, %v1602
  %v1604 = vlaneseq
  %v1605 = vshrl.u32 %v1604, 7
  %v1606 = vsub.s32 3, %v1605
  %v1607 = vrot.slane %v1564, %v1606
  %v1608 = vlaneseq
  %v1609 = vshrl.u32 %v1608, 7
  %v1610 = vsub.s32 3, %v1609
  %v1611 = vrot.slane %v1565, %v1610
  %v1612 = vlaneseq
  %v1613 = vshrl.u32 %v1612, 7
  %v1614 = vsub.s32 3, %v1613
  %v1615 = vrot.slane %v1566, %v1614
  %v1616 = vlaneseq
  %v1617 = vshrl.u32 %v1616, 7
  %v1618 = vsub.s32 3, %v1617
  %v1619 = vrot.slane %v1567, %v1618
  %v1620 = vlaneseq
  %v1621 = vshrl.u32 %v1620, 7
  %v1622 = vsub.s32 3, %v1621
  %v1623 = vrot.slane %v1568, %v1622
  %v1624 = vlaneseq
  %v1625 = vshrl.u32 %v1624, 7
  %v1626 = vsub.s32 3, %v1625
  %v1627 = vrot.slane %v1569, %v1626
  %v1628 = vlaneseq
  %v1629 = vshrl.u32 %v1628, 7
  %v1630 = vsub.s32 3, %v1629
  %v1631 = vrot.slane %v1570, %v1630
  %v1632 = vlaneseq
  %v1633 = vshrl.u32 %v1632, 7
  %v1634 = vsub.s32 3, %v1633
  %v1635 = vrot.slane %v1571, %v1634
  %vm1636 = vcmask 1042432
  %v1637 = vsel %vm1636, %v1575, %v1607
  %v1638 = vsel %vm1636, %v1579, %v1611
  %v1639 = vsel %vm1636, %v1583, %v1615
  %v1640 = vsel %vm1636, %v1587, %v1619
  %v1641 = vsel %vm1636, %v1591, %v1623
  %v1642 = vsel %vm1636, %v1595, %v1627
  %v1643 = vsel %vm1636, %v1599, %v1631
  %v1644 = vsel %vm1636, %v1603, %v1635
  %v1645 = vmul.f32 %v67, %v1637
  %v1646 = vmul.f32 %v68, %v1638
  %v1647 = vmul.f32 %v69, %v1639
  %v1648 = vmul.f32 %v70, %v1640
  %v1649 = vmul.f32 %v71, %v1641
  %v1650 = vmul.f32 %v72, %v1642
  %v1651 = vmul.f32 %v73, %v1643
  %v1652 = vmul.f32 %v74, %v1644
  %1653 = vst [vmem:[%s8] sm:$0x3f] %v1645
  %1654 = vst [vmem:[%s8 + $0x8] sm:$0x3f] %v1646
  %1655 = vst [vmem:[%s8 + $0x10] sm:$0x3f] %v1647
  %1656 = vst [vmem:[%s8 + $0x18] sm:$0x3f] %v1648
  %1657 = vst [vmem:[%s8 + $0x20] sm:$0x3f] %v1649
  %1658 = vst [vmem:[%s8 + $0x28] sm:$0x3f] %v1650
  %1659 = vst [vmem:[%s8 + $0x30] sm:$0x3f] %v1651
  %1660 = vst [vmem:[%s8 + $0x38] sm:$0x3f] %v1652
  %vm1661 = vcmask 1045504
  %v1662 = vsel %vm1661, %v1645, 0.0
  %v1663 = vsel %vm1661, %v1646, 0.0
  %v1664 = vadd.f32 %v1662, %v1663
  %v1665 = vsel %vm1661, %v1647, 0.0
  %v1666 = vadd.f32 %v1664, %v1665
  %v1667 = vsel %vm1661, %v1648, 0.0
  %v1668 = vadd.f32 %v1666, %v1667
  %v1669 = vsel %vm1661, %v1649, 0.0
  %v1670 = vadd.f32 %v1668, %v1669
  %v1671 = vsel %vm1661, %v1650, 0.0
  %v1672 = vadd.f32 %v1670, %v1671
  %v1673 = vsel %vm1661, %v1651, 0.0
  %v1674 = vadd.f32 %v1672, %v1673
  %v1675 = vsel %vm1661, %v1652, 0.0
  %v1676 = vadd.f32 %v1674, %v1675
  %1677 = vadd.xlane.f32.xlu0 %v1676
  %v1678 = vpop.xlane.xlu0 %1677
  %v1679 = vrcp.pop 1024.0
  %v1680 = vmul.f32 %v1678, %v1679
  %v1681 = vld [vmem:[%s1] sm:$0x3f]
  %v1682 = vld [vmem:[%s1 + $0x8] sm:$0x3f]
  %v1683 = vld [vmem:[%s1 + $0x10] sm:$0x3f]
  %v1684 = vld [vmem:[%s1 + $0x18] sm:$0x3f]
  %v1685 = vld [vmem:[%s1 + $0x20] sm:$0x3f]
  %v1686 = vld [vmem:[%s1 + $0x28] sm:$0x3f]
  %v1687 = vld [vmem:[%s1 + $0x30] sm:$0x3f]
  %v1688 = vld [vmem:[%s1 + $0x38] sm:$0x3f]
  %v1689 = vsel %vm1661, %v1681, 0.0
  %v1690 = vsel %vm1661, %v1682, 0.0
  %v1691 = vadd.f32 %v1689, %v1690
  %v1692 = vsel %vm1661, %v1683, 0.0
  %v1693 = vadd.f32 %v1691, %v1692
  %v1694 = vsel %vm1661, %v1684, 0.0
  %v1695 = vadd.f32 %v1693, %v1694
  %v1696 = vsel %vm1661, %v1685, 0.0
  %v1697 = vadd.f32 %v1695, %v1696
  %v1698 = vsel %vm1661, %v1686, 0.0
  %v1699 = vadd.f32 %v1697, %v1698
  %v1700 = vsel %vm1661, %v1687, 0.0
  %v1701 = vadd.f32 %v1699, %v1700
  %v1702 = vsel %vm1661, %v1688, 0.0
  %v1703 = vadd.f32 %v1701, %v1702
  %1704 = vadd.xlane.f32.xlu0 %v1703
  %v1705 = vpop.xlane.xlu0 %1704
  %v1706 = vmul.f32 %v1705, %v1679
  %v1707 = vsub.f32 %v1706, %v29
  %1708 = vrot.lane.b32.xlu0 %v29, 127
  %v1709 = vpop.permute.xlu0 %1708
  %v1711 = vmul.f32 %v1707, %v1709
  %v1712 = vmul.f32 %v1680, %v30
  %vm1713 = vcmask 34816
  %v1714 = vsel %vm1713, %v1712, 0.0
  %v1715 = vrot.slane %v1714, 4
  %v1716 = vadd.f32 %v1714, %v1715
  %v1717 = vrot.slane %v1716, 2
  %v1718 = vadd.f32 %v1716, %v1717
  %v1719 = vrot.slane %v1718, 1
  %v1720 = vadd.f32 %v1718, %v1719
  %1722 = vset.pattern.permute.xlu0 0
  %1723 = vperm.xlu0 %1722, %v1711
  %v1724 = vpop.permute.xlu0 %1723
  %v1726 = vmul.f32 %v1724, %v31
  %v1727 = vsel %vm1713, %v1726, 0.0
  %v1728 = vrot.slane %v1727, 4
  %v1729 = vadd.f32 %v1727, %v1728
  %v1730 = vrot.slane %v1729, 2
  %v1731 = vadd.f32 %v1729, %v1730
  %v1732 = vrot.slane %v1731, 1
  %v1733 = vadd.f32 %v1731, %v1732
  %v1734 = vadd.f32 %v1720, %v1733
  %v1736 = vrot.slane %v30, 5
  %v1738 = vmul.f32 %v1680, %v1736
  %v1740 = vrot.slane %v1738, 3
  %v1742 = vsel %vm1713, %v1740, 0.0
  %v1743 = vrot.slane %v1742, 4
  %v1744 = vadd.f32 %v1742, %v1743
  %v1745 = vrot.slane %v1744, 2
  %v1746 = vadd.f32 %v1744, %v1745
  %v1747 = vrot.slane %v1746, 1
  %v1748 = vadd.f32 %v1746, %v1747
  %v1750 = vrot.slane %v31, 5
  %v1752 = vmul.f32 %v1724, %v1750
  %v1754 = vrot.slane %v1752, 3
  %v1756 = vsel %vm1713, %v1754, 0.0
  %v1757 = vrot.slane %v1756, 4
  %v1758 = vadd.f32 %v1756, %v1757
  %v1759 = vrot.slane %v1758, 2
  %v1760 = vadd.f32 %v1758, %v1759
  %v1761 = vrot.slane %v1760, 1
  %v1762 = vadd.f32 %v1760, %v1761
  %v1763 = vadd.f32 %v1748, %v1762
  %v1764 = vsel %vm886, %v1734, %v1763
  %v1766 = vsel %vm756, %v803, 0
  %1768 = vmatprep.subr.mxu0 0.0
  %1769 = vmatpush1.msra.mxu0 0.0
  %1770 = vmatprep.subr.mxu0 0.0
  %1771 = vmatpush1.msra.mxu0 0.0
  %1772 = vmatprep.subr.mxu0 0.0
  %1773 = vmatpush1.msra.mxu0 0.0
  %1774 = vmatprep.subr.mxu0 0.0
  %1775 = vmatpush1.msra.mxu0 0.0
  %1776 = vmatprep.subr.mxu0 0.0
  %1777 = vmatpush1.msra.mxu0 0.0
  %1778 = vmatprep.subr.mxu0 0.0
  %1779 = vmatpush1.msra.mxu0 0.0
  %1780 = vmatprep.subr.mxu0 0.0
  %1781 = vmatpush1.msra.mxu0 0.0
  %1782 = vmatprep.subr.mxu0 0.0
  %1783 = vmatpush1.msra.mxu0 0.0
  %1784 = vmatprep.subr.mxu0 0.0
  %1785 = vmatpush1.msra.mxu0 0.0
  %1786 = vmatprep.subr.mxu0 0.0
  %1787 = vmatpush1.msra.mxu0 0.0
  %1788 = vmatprep.subr.mxu0 0.0
  %1789 = vmatpush1.msra.mxu0 0.0
  %1790 = vmatprep.subr.mxu0 0.0
  %1791 = vmatpush1.msra.mxu0 0.0
  %1792 = vmatprep.subr.mxu0 0.0
  %1793 = vmatpush1.msra.mxu0 %v35
  %1794 = vmatprep.subr.mxu0 0.0
  %1795 = vmatpush1.msra.mxu0 %v34
  %1796 = vmatprep.subr.mxu0 0.0
  %1797 = vmatpush1.msra.mxu0 %v33
  %1798 = vmatprep.subr.mxu0 0.0
  %1799 = vmatpush1.msra.mxu0 %v32
  %1800 = vmatprep.subr.mxu0 0.0
  %1801 = vmatpush2.msra.mxu0 0.0
  %1802 = vmatprep.subr.mxu0 0.0
  %1803 = vmatpush2.msra.mxu0 0.0
  %1804 = vmatprep.subr.mxu0 0.0
  %1805 = vmatpush2.msra.mxu0 0.0
  %1806 = vmatprep.subr.mxu0 0.0
  %1807 = vmatpush2.msra.mxu0 0.0
  %1808 = vmatprep.subr.mxu0 0.0
  %1809 = vmatpush2.msra.mxu0 0.0
  %1810 = vmatprep.subr.mxu0 0.0
  %1811 = vmatpush2.msra.mxu0 0.0
  %1812 = vmatprep.subr.mxu0 0.0
  %1813 = vmatpush2.msra.mxu0 0.0
  %1814 = vmatprep.subr.mxu0 0.0
  %1815 = vmatpush2.msra.mxu0 0.0
  %1816 = vmatprep.subr.mxu0 0.0
  %1817 = vmatpush2.msra.mxu0 0.0
  %1818 = vmatprep.subr.mxu0 0.0
  %1819 = vmatpush2.msra.mxu0 0.0
  %1820 = vmatprep.subr.mxu0 0.0
  %1821 = vmatpush2.msra.mxu0 0.0
  %1822 = vmatprep.subr.mxu0 0.0
  %1823 = vmatpush2.msra.mxu0 0.0
  %1824 = vmatprep.subr.mxu0 0.0
  %1825 = vmatpush2.msra.mxu0 0.0
  %1826 = vmatprep.subr.mxu0 0.0
  %1827 = vmatpush2.msra.mxu0 0.0
  %1828 = vmatprep.subr.mxu0 0.0
  %1829 = vmatpush2.msra.mxu0 0.0
  %1830 = vmatprep.subr.mxu0 0.0
  %1831 = vmatpush2.msra.mxu0 0.0
  %1832 = vmatprep.mubr.f32.mxu0 0.0
  %1833 = vmatmul.mubr.f32.gmra.mxu0 %v1766
  %v1834 = vpop.f32.mrf.mxu0
  %v1835 = vadd.f32 0.0, %v1834
  %v1836 = vpop.f32.mrf.mxu0
  %1837 = vdwg.mxu0
  %v1838 = vadd.f32 %v1764, %v1835
  %1839 = vst [vmem:[%s7] sm:$0xff] %v931
  %1840 = vst [vmem:[%s7 + $0x8] sm:$0xff] %v1005
  %1841 = vst [vmem:[%s7 + $0x10] sm:$0xff] 0.0
  %1842 = vst [vmem:[%s7 + $0x18] sm:$0xff] 0.0
  %1843 = vst.msk [vmem:[%s7 + $0x10] sm:$0xff] %vm1081, %v1075
  %1844 = vst.msk [vmem:[%s7 + $0x18] sm:$0xff] %vm1081, %v1078
  %1845 = vst [vmem:[%s7 + $0x20] sm:$0xff] 0.0
  %vm1846 = vcmask 33792
  %1847 = vst.msk [vmem:[%s7 + $0x20] sm:$0x3] %vm1846, %v1838
  // Predicated region
  $region30: #{forward.1} parent=0 // pred_check
    _
  $region31: #{forward.1} parent=0 // pred_check_branch
    %1849 = sbr.rel (0) target = $region33
  $region32: #{forward.1} parent=0 // pred_region
    _
  $region33: #{forward.1} parent=0 // pred_fallthru
    _
  // Predicated region
  $region34: #{forward.1} parent=0 // pred_check
    _
  $region35: #{forward.1} parent=0 // pred_check_branch
    %1851 = sbr.rel (0) target = $region37
  $region36: #{forward.1} parent=0 // pred_region
    _
  $region37: #{forward.1} parent=0 // pred_fallthru
    _
  // Predicated region
  $region38: #{forward.1} parent=0 // pred_check
    _
  $region39: #{forward.1} parent=0 // pred_check_branch
    %1853 = sbr.rel (0) target = $region41
  $region40: #{forward.1} parent=0 // pred_region
    _
  $region41: #{forward.1} parent=0 // pred_fallthru
    _
  // Predicated region
  $region42: #{forward.1} parent=0 // pred_check
    _
  $region43: #{forward.1} parent=0 // pred_check_branch
    %1855 = sbr.rel (0) target = $region45
  $region44: #{forward.1} parent=0 // pred_region
    _
  $region45: #{forward.1} parent=0 // pred_fallthru
    _

</llo_original>
